<compile_context>
chip_gen: v5e
topology: v5e:2x2
jax: 0.10.0
libtpu: 0.0.40
codegen_flags: <defaults>
</compile_context>

<pallas_src>
import functools

import jax
import jax.numpy as jnp
from jax import lax
from jax.experimental import pallas as pl
from jax.experimental.pallas import tpu as pltpu

GRID_SP = 0.5
N_GRID = (48, 48, 48)
VDW_O = 1.52  # vdw_dic['O']


def _wat_kernel(vecs_ref, yz_ref, out_ref, *, n_vec, rows_per_block,
                weight, thr2, grid_sp):
    """vecs_ref: SMEM (3*n_vec,) f32, flattened water-O coordinates.
    yz_ref:   VMEM (2, COLS) f32, per-column y / z coordinates (COLS = G1*G2).
    out_ref:  VMEM (2, rows_per_block, COLS) f32, output block."""
    blk = pl.program_id(0)
    RB = rows_per_block
    COLS = yz_ref.shape[1]

    # x coordinate varies only along the (sublane) row axis of this block.
    row = lax.broadcasted_iota(jnp.int32, (RB, 1), 0) + blk * RB
    xv = row.astype(jnp.float32) * jnp.float32(grid_sp)          # (RB, 1)

    yz = yz_ref[...]                                             # (2, COLS)
    yv = yz[0:1, :]                                              # (1, COLS)
    zv = yz[1:2, :]                                              # (1, COLS)

    def atom_d2(n):
        vx = vecs_ref[3 * n]
        vy = vecs_ref[3 * n + 1]
        vz = vecs_ref[3 * n + 2]
        dx = vx - xv                           # (RB, 1)   row-only term
        dy = vy - yv                           # (1, COLS) column-only terms
        dz = vz - zv                           # (1, COLS)
        col_d2 = dy * dy + dz * dz             # (1, COLS)
        row_d2 = dx * dx                       # (RB, 1)
        return row_d2 + col_d2                 # (RB, COLS) via broadcast

    # Seed the accumulator with atom 0 (n_vec >= 1 guaranteed by wrapper).
    init = atom_d2(0)

    def body(n, acc):
        return jnp.minimum(acc, atom_d2(n))

    unroll = min(max(n_vec - 1, 1), 8)
    min_d2 = lax.fori_loop(1, n_vec, body, init, unroll=unroll)

    # min_d2 < thr2  <=>  at least one atom with d < thr  <=>  count >= 0.9
    hit = (min_d2 < jnp.float32(thr2)).astype(jnp.float32)       # (RB, COLS)
    out_ref[0] = hit
    out_ref[1] = jnp.float32(1.0) + jnp.float32(weight - 1.0) * hit


def model_wat_forward(vecs, weight=25.0, multi=1.5,
                      grid_sp=GRID_SP, n_grid=N_GRID):
    """vecs: dict {'wat': {'O': (N, 3) array of coordinates}} (mirrors PyTorch)."""
    wat_o = jnp.asarray(vecs['wat']['O'], dtype=jnp.float32)
    n_vec = int(wat_o.shape[0])
    G0, G1, G2 = n_grid
    COLS = G1 * G2  # lane-dense flattened (Y, Z) axis; 2304 = 18 * 128

    if n_vec == 0:
        # No water atoms: channel 0 is all zeros, channel 1 is all ones.
        ch0 = jnp.zeros((1, G0, G1, G2), jnp.float32)
        ch1 = jnp.ones((1, G0, G1, G2), jnp.float32)
        return jnp.concatenate([ch0, ch1], axis=0)

    # Two spatial blocks along X: lets both TensorCores run on v7x; on
    # v5e/v6e it only adds one cheap grid step.
    if G0 % 2 == 0 and (G0 // 2) % 8 == 0:
        n_blocks = 2
    else:
        n_blocks = 1
    rb = G0 // n_blocks

    # Per-column y / z physical coordinates (column c = j*G2 + k).
    c = jnp.arange(COLS, dtype=jnp.int32)
    yz = jnp.stack(
        [(c // G2).astype(jnp.float32) * jnp.float32(grid_sp),
         (c % G2).astype(jnp.float32) * jnp.float32(grid_sp)], axis=0)

    vec_flat = wat_o.reshape(-1)                  # 1-D SMEM: no 2-D padding

    thr = float(multi) * float(VDW_O)
    thr2 = thr * thr

    kernel = functools.partial(
        _wat_kernel, n_vec=n_vec, rows_per_block=rb,
        weight=float(weight), thr2=thr2, grid_sp=float(grid_sp))

    out_flat = pl.pallas_call(
        kernel,
        out_shape=jax.ShapeDtypeStruct((2, G0, COLS), jnp.float32),
        grid=(n_blocks,),
        in_specs=[pl.BlockSpec(memory_space=pltpu.MemorySpace.SMEM),
                  pl.BlockSpec((2, COLS), lambda i: (0, 0))],
        out_specs=pl.BlockSpec((2, rb, COLS), lambda i: (0, i, 0)),
        compiler_params=pltpu.CompilerParams(
            dimension_semantics=("parallel",)),
    )(vec_flat, yz)

    return out_flat.reshape(2, G0, G1, G2)


def _reference(wat_o, weight=25.0, multi=1.5, grid_sp=GRID_SP, n_grid=N_GRID):
    """Pure-JAX reference with the same squared-distance formulation."""
    G0, G1, G2 = n_grid
    gs = jnp.float32(grid_sp)
    xs = jnp.arange(G0, dtype=jnp.int32).astype(jnp.float32) * gs
    ys = jnp.arange(G1, dtype=jnp.int32).astype(jnp.float32) * gs
    zs = jnp.arange(G2, dtype=jnp.int32).astype(jnp.float32) * gs
    dx = wat_o[:, 0][:, None] - xs[None, :]          # (N, G0)
    dy = wat_o[:, 1][:, None] - ys[None, :]          # (N, G1)
    dz = wat_o[:, 2][:, None] - zs[None, :]          # (N, G2)
    d2 = ((dx * dx)[:, :, None, None]
          + ((dy * dy)[:, None, :, None] + (dz * dz)[:, None, None, :]))
    thr = float(multi) * float(VDW_O)
    min_d2 = jnp.min(d2, axis=0)                     # (G0, G1, G2)
    hit = min_d2 < jnp.float32(thr * thr)
    ch0 = jnp.where(hit, jnp.float32(1.0), jnp.float32(0.0))
    ch1 = jnp.where(hit, jnp.float32(weight), jnp.float32(1.0))
    return jnp.stack([ch0, ch1], axis=0)


if __name__ == "__main__":
    key = jax.random.PRNGKey(0)
    n_waters = 8
    # Water O coordinates inside the 24 A box, quantized to multiples of
    # 0.125 A so every squared distance is exactly representable in f32 and
    # the kernel/reference comparison is bit-deterministic (avoids 1-ulp
    # boundary effects at the cutoff sphere).
    raw = jax.random.uniform(key, (n_waters, 3), dtype=jnp.float32,
                             minval=2.0, maxval=22.0)
    wat_o = jnp.round(raw * 8.0) / 8.0
    vecs = {'wat': {'O': wat_o}}

    out = model_wat_forward(vecs, weight=25.0, multi=1.5)
    out = jax.block_until_ready(out)

    assert out.shape == (2, 48, 48, 48) and out.dtype == jnp.float32

    ref = _reference(wat_o)
    if not bool(jnp.array_equal(out, ref)):
        raise AssertionError("Pallas kernel output does not match reference")

    print("KERNEL_OK")
</pallas_src>

<mosaic_0001>
module attributes {stable_mosaic.version = 11 : i64} {
  func.func @_wat_kernel(%arg0: i32, %arg1: memref<24xf32, #tpu.memory_space<smem>>, %arg2: memref<2x2304xf32, #tpu.memory_space<vmem>>, %arg3: memref<2x24x2304xf32, #tpu.memory_space<vmem>>) attributes {dimension_semantics = [#tpu.dimension_semantics<parallel>], iteration_bounds = array<i64: 2>, scalar_prefetch = 0 : i64, scratch_operands = 0 : i64, tpu.core_type = #tpu.core_type<tc>, window_params = [{transform_indices = @transform_0, window_bounds = array<i64: 24>}, {pipeline_mode = #tpu.pipeline_mode<synchronous>, transform_indices = @transform_1, window_bounds = array<i64: 2, 2304>}, {transform_indices = @transform_2, window_bounds = array<i64: 2, 24, 2304>}]} {
    %0 = tpu.iota {dimensions = array<i32: 0>} : vector<24x1xi32>
    %c24_i32 = arith.constant 24 : i32
    %1 = arith.muli %arg0, %c24_i32 : i32
    %2 = vector.broadcast %1 : i32 to vector<24x1xi32>
    %3 = arith.addi %0, %2 : vector<24x1xi32>
    %4 = arith.sitofp %3 : vector<24x1xi32> to vector<24x1xf32>
    %cst = arith.constant 5.000000e-01 : f32
    %5 = vector.broadcast %cst : f32 to vector<24x1xf32>
    %6 = arith.mulf %4, %5 : vector<24x1xf32>
    %c0 = arith.constant 0 : index
    %c0_0 = arith.constant 0 : index
    %7 = vector.load %arg2[%c0, %c0_0] : memref<2x2304xf32, #tpu.memory_space<vmem>>, vector<2x2304xf32>
    %8 = vector.extract_strided_slice %7 {offsets = [0, 0], sizes = [1, 2304], strides = [1, 1]} : vector<2x2304xf32> to vector<1x2304xf32>
    %9 = vector.extract_strided_slice %7 {offsets = [1, 0], sizes = [1, 2304], strides = [1, 1]} : vector<2x2304xf32> to vector<1x2304xf32>
    %c0_1 = arith.constant 0 : index
    %10 = memref.load %arg1[%c0_1] : memref<24xf32, #tpu.memory_space<smem>>
    %c1 = arith.constant 1 : index
    %11 = memref.load %arg1[%c1] : memref<24xf32, #tpu.memory_space<smem>>
    %c2 = arith.constant 2 : index
    %12 = memref.load %arg1[%c2] : memref<24xf32, #tpu.memory_space<smem>>
    %13 = vector.broadcast %10 : f32 to vector<24x1xf32>
    %14 = arith.subf %13, %6 : vector<24x1xf32>
    %15 = vector.broadcast %11 : f32 to vector<1x2304xf32>
    %16 = arith.subf %15, %8 : vector<1x2304xf32>
    %17 = vector.broadcast %12 : f32 to vector<1x2304xf32>
    %18 = arith.subf %17, %9 : vector<1x2304xf32>
    %19 = arith.mulf %16, %16 : vector<1x2304xf32>
    %20 = arith.mulf %18, %18 : vector<1x2304xf32>
    %21 = arith.addf %19, %20 : vector<1x2304xf32>
    %22 = arith.mulf %14, %14 : vector<24x1xf32>
    %23 = vector.broadcast %22 : vector<24x1xf32> to vector<24x2304xf32>
    %24 = vector.broadcast %21 : vector<1x2304xf32> to vector<24x2304xf32>
    %25 = arith.addf %23, %24 : vector<24x2304xf32>
    %c1_i32 = arith.constant 1 : i32
    %c3_i32 = arith.constant 3 : i32
    %26 = arith.muli %c3_i32, %c1_i32 : i32
    %27 = arith.index_cast %26 : i32 to index
    %28 = memref.load %arg1[%27] : memref<24xf32, #tpu.memory_space<smem>>
    %c3_i32_2 = arith.constant 3 : i32
    %29 = arith.muli %c3_i32_2, %c1_i32 : i32
    %c1_i32_3 = arith.constant 1 : i32
    %30 = arith.addi %29, %c1_i32_3 : i32
    %31 = arith.index_cast %30 : i32 to index
    %32 = memref.load %arg1[%31] : memref<24xf32, #tpu.memory_space<smem>>
    %c3_i32_4 = arith.constant 3 : i32
    %33 = arith.muli %c3_i32_4, %c1_i32 : i32
    %c2_i32 = arith.constant 2 : i32
    %34 = arith.addi %33, %c2_i32 : i32
    %35 = arith.index_cast %34 : i32 to index
    %36 = memref.load %arg1[%35] : memref<24xf32, #tpu.memory_space<smem>>
    %37 = vector.broadcast %28 : f32 to vector<24x1xf32>
    %38 = arith.subf %37, %6 : vector<24x1xf32>
    %39 = vector.broadcast %32 : f32 to vector<1x2304xf32>
    %40 = arith.subf %39, %8 : vector<1x2304xf32>
    %41 = vector.broadcast %36 : f32 to vector<1x2304xf32>
    %42 = arith.subf %41, %9 : vector<1x2304xf32>
    %43 = arith.mulf %40, %40 : vector<1x2304xf32>
    %44 = arith.mulf %42, %42 : vector<1x2304xf32>
    %45 = arith.addf %43, %44 : vector<1x2304xf32>
    %46 = arith.mulf %38, %38 : vector<24x1xf32>
    %47 = vector.broadcast %46 : vector<24x1xf32> to vector<24x2304xf32>
    %48 = vector.broadcast %45 : vector<1x2304xf32> to vector<24x2304xf32>
    %49 = arith.addf %47, %48 : vector<24x2304xf32>
    %50 = arith.minimumf %25, %49 : vector<24x2304xf32>
    %c2_i32_5 = arith.constant 2 : i32
    %c3_i32_6 = arith.constant 3 : i32
    %51 = arith.muli %c3_i32_6, %c2_i32_5 : i32
    %52 = arith.index_cast %51 : i32 to index
    %53 = memref.load %arg1[%52] : memref<24xf32, #tpu.memory_space<smem>>
    %c3_i32_7 = arith.constant 3 : i32
    %54 = arith.muli %c3_i32_7, %c2_i32_5 : i32
    %c1_i32_8 = arith.constant 1 : i32
    %55 = arith.addi %54, %c1_i32_8 : i32
    %56 = arith.index_cast %55 : i32 to index
    %57 = memref.load %arg1[%56] : memref<24xf32, #tpu.memory_space<smem>>
    %c3_i32_9 = arith.constant 3 : i32
    %58 = arith.muli %c3_i32_9, %c2_i32_5 : i32
    %c2_i32_10 = arith.constant 2 : i32
    %59 = arith.addi %58, %c2_i32_10 : i32
    %60 = arith.index_cast %59 : i32 to index
    %61 = memref.load %arg1[%60] : memref<24xf32, #tpu.memory_space<smem>>
    %62 = vector.broadcast %53 : f32 to vector<24x1xf32>
    %63 = arith.subf %62, %6 : vector<24x1xf32>
    %64 = vector.broadcast %57 : f32 to vector<1x2304xf32>
    %65 = arith.subf %64, %8 : vector<1x2304xf32>
    %66 = vector.broadcast %61 : f32 to vector<1x2304xf32>
    %67 = arith.subf %66, %9 : vector<1x2304xf32>
    %68 = arith.mulf %65, %65 : vector<1x2304xf32>
    %69 = arith.mulf %67, %67 : vector<1x2304xf32>
    %70 = arith.addf %68, %69 : vector<1x2304xf32>
    %71 = arith.mulf %63, %63 : vector<24x1xf32>
    %72 = vector.broadcast %71 : vector<24x1xf32> to vector<24x2304xf32>
    %73 = vector.broadcast %70 : vector<1x2304xf32> to vector<24x2304xf32>
    %74 = arith.addf %72, %73 : vector<24x2304xf32>
    %75 = arith.minimumf %50, %74 : vector<24x2304xf32>
    %c3_i32_11 = arith.constant 3 : i32
    %c3_i32_12 = arith.constant 3 : i32
    %76 = arith.muli %c3_i32_12, %c3_i32_11 : i32
    %77 = arith.index_cast %76 : i32 to index
    %78 = memref.load %arg1[%77] : memref<24xf32, #tpu.memory_space<smem>>
    %c3_i32_13 = arith.constant 3 : i32
    %79 = arith.muli %c3_i32_13, %c3_i32_11 : i32
    %c1_i32_14 = arith.constant 1 : i32
    %80 = arith.addi %79, %c1_i32_14 : i32
    %81 = arith.index_cast %80 : i32 to index
    %82 = memref.load %arg1[%81] : memref<24xf32, #tpu.memory_space<smem>>
    %c3_i32_15 = arith.constant 3 : i32
    %83 = arith.muli %c3_i32_15, %c3_i32_11 : i32
    %c2_i32_16 = arith.constant 2 : i32
    %84 = arith.addi %83, %c2_i32_16 : i32
    %85 = arith.index_cast %84 : i32 to index
    %86 = memref.load %arg1[%85] : memref<24xf32, #tpu.memory_space<smem>>
    %87 = vector.broadcast %78 : f32 to vector<24x1xf32>
    %88 = arith.subf %87, %6 : vector<24x1xf32>
    %89 = vector.broadcast %82 : f32 to vector<1x2304xf32>
    %90 = arith.subf %89, %8 : vector<1x2304xf32>
    %91 = vector.broadcast %86 : f32 to vector<1x2304xf32>
    %92 = arith.subf %91, %9 : vector<1x2304xf32>
    %93 = arith.mulf %90, %90 : vector<1x2304xf32>
    %94 = arith.mulf %92, %92 : vector<1x2304xf32>
    %95 = arith.addf %93, %94 : vector<1x2304xf32>
    %96 = arith.mulf %88, %88 : vector<24x1xf32>
    %97 = vector.broadcast %96 : vector<24x1xf32> to vector<24x2304xf32>
    %98 = vector.broadcast %95 : vector<1x2304xf32> to vector<24x2304xf32>
    %99 = arith.addf %97, %98 : vector<24x2304xf32>
    %100 = arith.minimumf %75, %99 : vector<24x2304xf32>
    %c4_i32 = arith.constant 4 : i32
    %c3_i32_17 = arith.constant 3 : i32
    %101 = arith.muli %c3_i32_17, %c4_i32 : i32
    %102 = arith.index_cast %101 : i32 to index
    %103 = memref.load %arg1[%102] : memref<24xf32, #tpu.memory_space<smem>>
    %c3_i32_18 = arith.constant 3 : i32
    %104 = arith.muli %c3_i32_18, %c4_i32 : i32
    %c1_i32_19 = arith.constant 1 : i32
    %105 = arith.addi %104, %c1_i32_19 : i32
    %106 = arith.index_cast %105 : i32 to index
    %107 = memref.load %arg1[%106] : memref<24xf32, #tpu.memory_space<smem>>
    %c3_i32_20 = arith.constant 3 : i32
    %108 = arith.muli %c3_i32_20, %c4_i32 : i32
    %c2_i32_21 = arith.constant 2 : i32
    %109 = arith.addi %108, %c2_i32_21 : i32
    %110 = arith.index_cast %109 : i32 to index
    %111 = memref.load %arg1[%110] : memref<24xf32, #tpu.memory_space<smem>>
    %112 = vector.broadcast %103 : f32 to vector<24x1xf32>
    %113 = arith.subf %112, %6 : vector<24x1xf32>
    %114 = vector.broadcast %107 : f32 to vector<1x2304xf32>
    %115 = arith.subf %114, %8 : vector<1x2304xf32>
    %116 = vector.broadcast %111 : f32 to vector<1x2304xf32>
    %117 = arith.subf %116, %9 : vector<1x2304xf32>
    %118 = arith.mulf %115, %115 : vector<1x2304xf32>
    %119 = arith.mulf %117, %117 : vector<1x2304xf32>
    %120 = arith.addf %118, %119 : vector<1x2304xf32>
    %121 = arith.mulf %113, %113 : vector<24x1xf32>
    %122 = vector.broadcast %121 : vector<24x1xf32> to vector<24x2304xf32>
    %123 = vector.broadcast %120 : vector<1x2304xf32> to vector<24x2304xf32>
    %124 = arith.addf %122, %123 : vector<24x2304xf32>
    %125 = arith.minimumf %100, %124 : vector<24x2304xf32>
    %c5_i32 = arith.constant 5 : i32
    %c3_i32_22 = arith.constant 3 : i32
    %126 = arith.muli %c3_i32_22, %c5_i32 : i32
    %127 = arith.index_cast %126 : i32 to index
    %128 = memref.load %arg1[%127] : memref<24xf32, #tpu.memory_space<smem>>
    %c3_i32_23 = arith.constant 3 : i32
    %129 = arith.muli %c3_i32_23, %c5_i32 : i32
    %c1_i32_24 = arith.constant 1 : i32
    %130 = arith.addi %129, %c1_i32_24 : i32
    %131 = arith.index_cast %130 : i32 to index
    %132 = memref.load %arg1[%131] : memref<24xf32, #tpu.memory_space<smem>>
    %c3_i32_25 = arith.constant 3 : i32
    %133 = arith.muli %c3_i32_25, %c5_i32 : i32
    %c2_i32_26 = arith.constant 2 : i32
    %134 = arith.addi %133, %c2_i32_26 : i32
    %135 = arith.index_cast %134 : i32 to index
    %136 = memref.load %arg1[%135] : memref<24xf32, #tpu.memory_space<smem>>
    %137 = vector.broadcast %128 : f32 to vector<24x1xf32>
    %138 = arith.subf %137, %6 : vector<24x1xf32>
    %139 = vector.broadcast %132 : f32 to vector<1x2304xf32>
    %140 = arith.subf %139, %8 : vector<1x2304xf32>
    %141 = vector.broadcast %136 : f32 to vector<1x2304xf32>
    %142 = arith.subf %141, %9 : vector<1x2304xf32>
    %143 = arith.mulf %140, %140 : vector<1x2304xf32>
    %144 = arith.mulf %142, %142 : vector<1x2304xf32>
    %145 = arith.addf %143, %144 : vector<1x2304xf32>
    %146 = arith.mulf %138, %138 : vector<24x1xf32>
    %147 = vector.broadcast %146 : vector<24x1xf32> to vector<24x2304xf32>
    %148 = vector.broadcast %145 : vector<1x2304xf32> to vector<24x2304xf32>
    %149 = arith.addf %147, %148 : vector<24x2304xf32>
    %150 = arith.minimumf %125, %149 : vector<24x2304xf32>
    %c6_i32 = arith.constant 6 : i32
    %c3_i32_27 = arith.constant 3 : i32
    %151 = arith.muli %c3_i32_27, %c6_i32 : i32
    %152 = arith.index_cast %151 : i32 to index
    %153 = memref.load %arg1[%152] : memref<24xf32, #tpu.memory_space<smem>>
    %c3_i32_28 = arith.constant 3 : i32
    %154 = arith.muli %c3_i32_28, %c6_i32 : i32
    %c1_i32_29 = arith.constant 1 : i32
    %155 = arith.addi %154, %c1_i32_29 : i32
    %156 = arith.index_cast %155 : i32 to index
    %157 = memref.load %arg1[%156] : memref<24xf32, #tpu.memory_space<smem>>
    %c3_i32_30 = arith.constant 3 : i32
    %158 = arith.muli %c3_i32_30, %c6_i32 : i32
    %c2_i32_31 = arith.constant 2 : i32
    %159 = arith.addi %158, %c2_i32_31 : i32
    %160 = arith.index_cast %159 : i32 to index
    %161 = memref.load %arg1[%160] : memref<24xf32, #tpu.memory_space<smem>>
    %162 = vector.broadcast %153 : f32 to vector<24x1xf32>
    %163 = arith.subf %162, %6 : vector<24x1xf32>
    %164 = vector.broadcast %157 : f32 to vector<1x2304xf32>
    %165 = arith.subf %164, %8 : vector<1x2304xf32>
    %166 = vector.broadcast %161 : f32 to vector<1x2304xf32>
    %167 = arith.subf %166, %9 : vector<1x2304xf32>
    %168 = arith.mulf %165, %165 : vector<1x2304xf32>
    %169 = arith.mulf %167, %167 : vector<1x2304xf32>
    %170 = arith.addf %168, %169 : vector<1x2304xf32>
    %171 = arith.mulf %163, %163 : vector<24x1xf32>
    %172 = vector.broadcast %171 : vector<24x1xf32> to vector<24x2304xf32>
    %173 = vector.broadcast %170 : vector<1x2304xf32> to vector<24x2304xf32>
    %174 = arith.addf %172, %173 : vector<24x2304xf32>
    %175 = arith.minimumf %150, %174 : vector<24x2304xf32>
    %c7_i32 = arith.constant 7 : i32
    %c3_i32_32 = arith.constant 3 : i32
    %176 = arith.muli %c3_i32_32, %c7_i32 : i32
    %177 = arith.index_cast %176 : i32 to index
    %178 = memref.load %arg1[%177] : memref<24xf32, #tpu.memory_space<smem>>
    %c3_i32_33 = arith.constant 3 : i32
    %179 = arith.muli %c3_i32_33, %c7_i32 : i32
    %c1_i32_34 = arith.constant 1 : i32
    %180 = arith.addi %179, %c1_i32_34 : i32
    %181 = arith.index_cast %180 : i32 to index
    %182 = memref.load %arg1[%181] : memref<24xf32, #tpu.memory_space<smem>>
    %c3_i32_35 = arith.constant 3 : i32
    %183 = arith.muli %c3_i32_35, %c7_i32 : i32
    %c2_i32_36 = arith.constant 2 : i32
    %184 = arith.addi %183, %c2_i32_36 : i32
    %185 = arith.index_cast %184 : i32 to index
    %186 = memref.load %arg1[%185] : memref<24xf32, #tpu.memory_space<smem>>
    %187 = vector.broadcast %178 : f32 to vector<24x1xf32>
    %188 = arith.subf %187, %6 : vector<24x1xf32>
    %189 = vector.broadcast %182 : f32 to vector<1x2304xf32>
    %190 = arith.subf %189, %8 : vector<1x2304xf32>
    %191 = vector.broadcast %186 : f32 to vector<1x2304xf32>
    %192 = arith.subf %191, %9 : vector<1x2304xf32>
    %193 = arith.mulf %190, %190 : vector<1x2304xf32>
    %194 = arith.mulf %192, %192 : vector<1x2304xf32>
    %195 = arith.addf %193, %194 : vector<1x2304xf32>
    %196 = arith.mulf %188, %188 : vector<24x1xf32>
    %197 = vector.broadcast %196 : vector<24x1xf32> to vector<24x2304xf32>
    %198 = vector.broadcast %195 : vector<1x2304xf32> to vector<24x2304xf32>
    %199 = arith.addf %197, %198 : vector<24x2304xf32>
    %200 = arith.minimumf %175, %199 : vector<24x2304xf32>
    %c7_i32_37 = arith.constant 7 : i32
    %cst_38 = arith.constant 5.198400e+00 : f32
    %201 = vector.broadcast %cst_38 : f32 to vector<24x2304xf32>
    %202 = arith.cmpf olt, %200, %201 : vector<24x2304xf32>
    %203 = arith.extui %202 : vector<24x2304xi1> to vector<24x2304xi32>
    %204 = arith.sitofp %203 : vector<24x2304xi32> to vector<24x2304xf32>
    %c0_39 = arith.constant 0 : index
    %c0_40 = arith.constant 0 : index
    %c0_41 = arith.constant 0 : index
    %205 = vector.load %arg3[%c0_39, %c0_40, %c0_41] : memref<2x24x2304xf32, #tpu.memory_space<vmem>>, vector<1x24x2304xf32>
    %206 = vector.shape_cast %205 : vector<1x24x2304xf32> to vector<24x2304xf32>
    %207 = vector.shape_cast %204 : vector<24x2304xf32> to vector<1x24x2304xf32>
    tpu.vector_store %arg3[%c0_39, %c0_40, %c0_41], %207 {strides = array<i32>} : memref<2x24x2304xf32, #tpu.memory_space<vmem>>, vector<1x24x2304xf32>,
    %cst_42 = arith.constant 2.400000e+01 : f32
    %208 = vector.broadcast %cst_42 : f32 to vector<24x2304xf32>
    %209 = arith.mulf %208, %204 : vector<24x2304xf32>
    %cst_43 = arith.constant 1.000000e+00 : f32
    %210 = vector.broadcast %cst_43 : f32 to vector<24x2304xf32>
    %211 = arith.addf %210, %209 : vector<24x2304xf32>
    %c1_44 = arith.constant 1 : index
    %c0_45 = arith.constant 0 : index
    %c0_46 = arith.constant 0 : index
    %212 = vector.load %arg3[%c1_44, %c0_45, %c0_46] : memref<2x24x2304xf32, #tpu.memory_space<vmem>>, vector<1x24x2304xf32>
    %213 = vector.shape_cast %212 : vector<1x24x2304xf32> to vector<24x2304xf32>
    %214 = vector.shape_cast %211 : vector<24x2304xf32> to vector<1x24x2304xf32>
    tpu.vector_store %arg3[%c1_44, %c0_45, %c0_46], %214 {strides = array<i32>} : memref<2x24x2304xf32, #tpu.memory_space<vmem>>, vector<1x24x2304xf32>,
    return
  }
  func.func @transform_0(%arg0: i32) -> i32 {
    %c0_i32 = arith.constant 0 : i32
    %c0_i32_0 = arith.constant 0 : i32
    return %c0_i32 : i32
  }
  func.func @transform_1(%arg0: i32) -> (i32, i32) {
    %c0_i32 = arith.constant 0 : i32
    %c0_i32_0 = arith.constant 0 : i32
    %c0_i32_1 = arith.constant 0 : i32
    return %c0_i32, %c0_i32_0 : i32, i32
  }
  func.func @transform_2(%arg0: i32) -> (i32, i32, i32) {
    %c0_i32 = arith.constant 0 : i32
    %c0_i32_0 = arith.constant 0 : i32
    %c0_i32_1 = arith.constant 0 : i32
    return %c0_i32, %arg0, %c0_i32_0 : i32, i32, i32
  }
}

</mosaic_0001>

<llo_original>
// kernel: tpu_custom_call.1
$region0: #{tpu_custom_call.1}
  #allocation0 [shape = 'u32[]', space=smem, size = 0x4, offset = 0x4, fixed_abs, tag = 'smem constant byte address 0x4 - core index']
  #allocation1 [shape = 'u32[72,128]{1,0:T(1,128)}', space=vmem, size = 0x9000, scoped, tag = 'internal scratch']
  #allocation8 [shape = 's32[]', space=sflag, size = 0x4, offset = 0, fixed_abs, tag = 'sflag constant byte address 0x0 - dummy sync flag']
  %s0 = inlined_call_operand.hbm [shape: f32[24], index: 0, kind: input, shape index: {}]
  %s1 = inlined_call_operand.hbm [shape: f32[2,2304], index: 1, kind: input, shape index: {}]
  %s2 = inlined_call_operand.hbm [shape: f32[2,48,2304], index: 2, kind: output, shape index: {}]
  %s3 = sld [smem:[#allocation0]]
  $region49: #{tpu_custom_call.1} parent=0
    _
  %s5 = ssub.s32 1, %s3
  %s6 = scalar_select 0, %s5, %s3
  $region1: #{tpu_custom_call.1} parent=0
    #allocation2 [shape = 'u8[512]{0}', space=smem, size = 0x200, scoped, tag = 'input window, operand 0, single buffered']
    #allocation3 [shape = 's32[2]{0}', space=sflag, size = 0x8, scoped, tag = 'scoped memory for tpu_custom_call.1']
    #allocation4 [shape = 's32[2]{0}', space=sflag, size = 0x8, scoped, tag = 'scoped memory for tpu_custom_call.1']
    #allocation5 [shape = 's32[2]{0}', space=sflag, size = 0x8, scoped, tag = 'scoped memory for tpu_custom_call.1']
    #allocation6 [shape = 'u8[18432]{0}', space=vmem, size = 0x4800, scoped, tag = 'input window, operand 1, single buffered']
    #allocation7 [shape = 'u8[884736]{0}', space=vmem, size = 0xd8000, scoped, tag = 'output window, operand 0']
    %7 = vsyncpa [#allocation5], 0
    %8 = vsyncpa [#allocation3], 0
    %9 = vsyncpa [#allocation4], 0
    %s10 = scalar_lea.sflag [#allocation4], 1
    %11 = vsyncpa %s10, 0
    loop: start=0, step=1, limit=4
    $region2: #{tpu_custom_call.1} parent=1 // loop_pre_header
      _
    $region3: #{tpu_custom_call.1} parent=1 // loop_header
      %s13 = sphi 0, %s17
      %p14 = scmp.ge.s32.totalorder %s13, 4
      %s21 = sphi 0, %s21
      %s23 = sphi 0, %s21
      %s24 = sphi 0, %s23
      %s38 = sphi 0, %s24
      %s42 = sphi 0, %s42
      %s44 = sphi 0, %s42
      %s45 = sphi 0, %s44
      %s59 = sphi 0, %s45
      %s65 = sphi 0, %s67
      %s68 = sphi 0, %s65
      %s69 = sphi 0, %s68
      %s85 = sphi 0, %s69
    $region4: #{tpu_custom_call.1} parent=1 // loop_header_branch
      %16 = sbr.rel (%p14) target = $region8
    $region5: #{tpu_custom_call.1} parent=1 // loop_body
      %s18 = ssub.s32 %s13, 1
      %s19 = ssub.s32 %s13, 2
      %s20 = sadd.s32 %s13, 1
      %s22 = sadd.s32 %s21, 1
      %p25 = scmp.eq.s32.totalorder %s13, 1
      %p26 = scmp.ne.s32.totalorder %s21, %s23
      %p27 = scmp.eq.s32.totalorder %s13, 0
      %p28 = por %p26, %p27
      %p29 = scmp.ne.s32.totalorder %s21, %s23
      %p30 = scmp.eq.s32.totalorder %s18, 1
      %p31 = por %p29, %p30
      %p32 = scmp.ne.s32.totalorder %s23, %s24
      %p33 = scmp.eq.s32.totalorder %s18, 0
      %p34 = por %p32, %p33
      %p35 = scmp.ne.s32.totalorder %s23, %s24
      %p36 = scmp.eq.s32.totalorder %s19, 1
      %p37 = por %p35, %p36
      %p39 = scmp.ne.s32.totalorder %s24, %s38
      %p40 = scmp.eq.s32.totalorder %s19, 0
      %p41 = por %p39, %p40
      %s43 = sadd.s32 %s42, 1
      %p46 = scmp.eq.s32.totalorder %s13, 1
      %p47 = scmp.ne.s32.totalorder %s42, %s44
      %p48 = scmp.eq.s32.totalorder %s13, 0
      %p49 = por %p47, %p48
      %p50 = scmp.ne.s32.totalorder %s42, %s44
      %p51 = scmp.eq.s32.totalorder %s18, 1
      %p52 = por %p50, %p51
      %p53 = scmp.ne.s32.totalorder %s44, %s45
      %p54 = scmp.eq.s32.totalorder %s18, 0
      %p55 = por %p53, %p54
      %p56 = scmp.ne.s32.totalorder %s44, %s45
      %p57 = scmp.eq.s32.totalorder %s19, 1
      %p58 = por %p56, %p57
      %p60 = scmp.ne.s32.totalorder %s45, %s59
      %p61 = scmp.eq.s32.totalorder %s19, 0
      %p62 = por %p60, %p61
      %s63 = ssub.s32 %s13, %s20
      %p64 = scmp.eq.s32.totalorder %s63, 0
      %s66 = sadd.s32 %s65, 1
      %s67 = scalar_select %p64, %s65, %s66
      %p70 = pneg %p64
      %p71 = scmp.eq.s32.totalorder %s13, 1
      %p72 = por %p70, %p71
      %p73 = scmp.ne.s32.totalorder %s65, %s68
      %p74 = scmp.eq.s32.totalorder %s13, 0
      %p75 = por %p73, %p74
      %p76 = scmp.ne.s32.totalorder %s65, %s68
      %p77 = scmp.eq.s32.totalorder %s18, 1
      %p78 = por %p76, %p77
      %p79 = scmp.ne.s32.totalorder %s68, %s69
      %p80 = scmp.eq.s32.totalorder %s18, 0
      %p81 = por %p79, %p80
      %p82 = scmp.ne.s32.totalorder %s68, %s69
      %p83 = scmp.eq.s32.totalorder %s19, 1
      %p84 = por %p82, %p83
      %p86 = scmp.ne.s32.totalorder %s69, %s85
      %p87 = scmp.eq.s32.totalorder %s19, 0
      %p88 = por %p86, %p87
      %p89 = scmp.le.s32.totalorder 1, %s13
      %p90 = scmp.lt.s32.totalorder %s13, 3
      %p91 = pnand %p89, %p90
      %p92 = pneg %p91
      // Predicated region
      $region9: #{tpu_custom_call.1} parent=5 // pred_check
        _
      $region10: #{tpu_custom_call.1} parent=5 // pred_check_branch
        %94 = sbr.rel (%p91) target = $region12
      $region11: #{tpu_custom_call.1} parent=5 // pred_region
        %s95 = ssub.s32 %s13, 1
        // Predicated region
        $region13: #{tpu_custom_call.1} parent=11 // pred_check
          %p96 = pneg %p34
        $region14: #{tpu_custom_call.1} parent=11 // pred_check_branch
          %98 = sbr.rel (%p96) target = $region16
        $region15: #{tpu_custom_call.1} parent=11 // pred_region
          %100 = vsyncadd [#allocation5], 0
          %s102 = sshll.u32 %s0, 4
          %s103 = int_to_ptr.hbm [resolvable:$true] %s102
          %105 = dma.hbm_to_smem %s103, 16, [#allocation2], [#allocation5]
        $region16: #{tpu_custom_call.1} parent=11 // pred_fallthru
          _
        // Predicated region
        $region17: #{tpu_custom_call.1} parent=11 // pred_check
          %p106 = pneg %p55
        $region18: #{tpu_custom_call.1} parent=11 // pred_check_branch
          %108 = sbr.rel (%p106) target = $region20
        $region19: #{tpu_custom_call.1} parent=11 // pred_region
          %110 = vsyncadd [#allocation3], 0
          %s112 = sshll.u32 %s1, 4
          %s113 = int_to_ptr.hbm [resolvable:$true] %s112
          %s114 = sshll.u32 [#allocation6], 4
          %s115 = int_to_ptr.vmem [resolvable:$true] %s114
          %117 = dma.hbm_to_vmem [thread:$0]  %s113, 576, %s115, [#allocation3]
        $region20: #{tpu_custom_call.1} parent=11 // pred_fallthru
          _
      $region12: #{tpu_custom_call.1} parent=5 // pred_fallthru
        _
      %p118 = scmp.lt.s32.totalorder %s13, 2
      // Predicated region
      $region21: #{tpu_custom_call.1} parent=5 // pred_check
        %p119 = pneg %p118
      $region22: #{tpu_custom_call.1} parent=5 // pred_check_branch
        %121 = sbr.rel (%p119) target = $region24
      $region23: #{tpu_custom_call.1} parent=5 // pred_region
        _
      $region24: #{tpu_custom_call.1} parent=5 // pred_fallthru
        _
      %p122 = scmp.le.s32.totalorder 1, %s13
      %p123 = scmp.lt.s32.totalorder %s13, 3
      %p124 = pnand %p122, %p123
      %p125 = pneg %p124
      // Predicated region
      $region25: #{tpu_custom_call.1} parent=5 // pred_check
        _
      $region26: #{tpu_custom_call.1} parent=5 // pred_check_branch
        %127 = sbr.rel (%p124) target = $region28
      $region27: #{tpu_custom_call.1} parent=5 // pred_region
        %s128 = ssub.s32 %s13, 1
        // Predicated region
        $region29: #{tpu_custom_call.1} parent=27 // pred_check
          %p129 = pneg %p34
        $region30: #{tpu_custom_call.1} parent=27 // pred_check_branch
          %131 = sbr.rel (%p129) target = $region32
        $region31: #{tpu_custom_call.1} parent=27 // pred_region
          %133 = dma.done [#allocation5], 16
        $region32: #{tpu_custom_call.1} parent=27 // pred_fallthru
          _
        // Predicated region
        $region33: #{tpu_custom_call.1} parent=27 // pred_check
          %p134 = pneg %p55
        $region34: #{tpu_custom_call.1} parent=27 // pred_check_branch
          %136 = sbr.rel (%p134) target = $region36
        $region35: #{tpu_custom_call.1} parent=27 // pred_region
          %138 = dma.done [#allocation3], 576
        $region36: #{tpu_custom_call.1} parent=27 // pred_fallthru
          _
        %139 = sfence
        %p140 = pneg %p34
        %p141 = pneg %p31
        %p142 = pneg %p55
        %p143 = pneg %p52
        %p144 = pneg %p81
        %p145 = pneg %p78
        %s146 = sand.u32 %s68, 1
        %s147 = scalar_lea.sflag [#allocation4], %s146
        %s148 = sand.u32 %s68, 1
        %s149 = smul.addr %s148, 864
        %s150 = scalar_lea.vmem [#allocation7], %s149
        %s151 = smul.u32 3, %s18
        %v152 = vlaneseq
        %v153 = vshrl.u32 %v152, 7
        %v154 = vadd.s32 %v153, 8
        %v155 = vadd.s32 %v153, 16
        %s156 = smul.u32 %s18, 24
        %v157 = vstv %s156
        %v158 = vadd.s32 %v153, %v157
        %v159 = vadd.s32 %v154, %v157
        %v160 = vadd.s32 %v155, %v157
        %v161 = vcvt.s32.f32 %v158
        %v162 = vcvt.s32.f32 %v159
        %v163 = vcvt.s32.f32 %v160
        %v164 = vmul.f32 %v161, 0.5
        %v165 = vmul.f32 %v162, 0.5
        %v166 = vmul.f32 %v163, 0.5
        %v167 = vld [vmem:[#allocation6] sm:$0xff]
        %v168 = vld [vmem:[#allocation6 + $0x8] sm:$0xff]
        %v169 = vld [vmem:[#allocation6 + $0x10] sm:$0xff]
        %v170 = vld [vmem:[#allocation6 + $0x18] sm:$0xff]
        %v171 = vld [vmem:[#allocation6 + $0x20] sm:$0xf]
        %s172 = sld [smem:[#allocation2]]
        %s173 = sld [smem:[#allocation2 + $0x1]]
        %s174 = sld [smem:[#allocation2 + $0x2]]
        %v175 = vstv %s172
        %v176 = vsub.f32 %v175, %v164
        %v177 = vsub.f32 %v175, %v165
        %v178 = vsub.f32 %v175, %v166
        %v179 = vstv %s173
        %v180 = vsub.f32 %v179, %v167
        %v181 = vsub.f32 %v179, %v168
        %v182 = vsub.f32 %v179, %v169
        %v183 = vsub.f32 %v179, %v170
        %v184 = vsub.f32 %v179, %v171
        %v185 = vstv %s174
        %v186 = vsub.f32 %v185, %v167
        %v187 = vsub.f32 %v185, %v168
        %v188 = vsub.f32 %v185, %v169
        %v189 = vsub.f32 %v185, %v170
        %v190 = vsub.f32 %v185, %v171
        %v191 = vmul.f32 %v180, %v180
        %v192 = vmul.f32 %v181, %v181
        %v193 = vmul.f32 %v182, %v182
        %v194 = vmul.f32 %v183, %v183
        %v195 = vmul.f32 %v184, %v184
        %v196 = vmul.f32 %v186, %v186
        %v197 = vmul.f32 %v187, %v187
        %v198 = vmul.f32 %v188, %v188
        %v199 = vmul.f32 %v189, %v189
        %v200 = vmul.f32 %v190, %v190
        %v206 = vrot.slane %v196, 7
        %v207 = vrot.slane %v206, 2
        %v208 = vrot.slane %v197, 7
        %v209 = vrot.slane %v208, 2
        %v210 = vrot.slane %v198, 7
        %v211 = vrot.slane %v210, 2
        %v212 = vrot.slane %v199, 7
        %v213 = vrot.slane %v212, 2
        %v214 = vrot.slane %v200, 7
        %v215 = vrot.slane %v214, 2
        %v221 = vadd.f32 %v191, %v207
        %v222 = vadd.f32 %v192, %v209
        %v223 = vadd.f32 %v193, %v211
        %v224 = vadd.f32 %v194, %v213
        %v225 = vadd.f32 %v195, %v215
        %v226 = vmul.f32 %v176, %v176
        %v227 = vmul.f32 %v177, %v177
        %v228 = vmul.f32 %v178, %v178
        %v234 = vperm.slane %v221, 0
        %v235 = vperm.slane %v221, 2
        %v236 = vperm.slane %v221, 4
        %v237 = vperm.slane %v221, 6
        %v238 = vperm.slane %v222, 0
        %v239 = vperm.slane %v222, 2
        %v240 = vperm.slane %v222, 4
        %v241 = vperm.slane %v222, 6
        %v242 = vperm.slane %v223, 0
        %v243 = vperm.slane %v223, 2
        %v244 = vperm.slane %v223, 4
        %v245 = vperm.slane %v223, 6
        %v246 = vperm.slane %v224, 0
        %v247 = vperm.slane %v224, 2
        %v248 = vperm.slane %v224, 4
        %v249 = vperm.slane %v224, 6
        %v250 = vperm.slane %v225, 0
        %v251 = vperm.slane %v225, 2
        %v270 = vperm.slane %v234, 0
        %v271 = vperm.slane %v235, 0
        %v272 = vperm.slane %v236, 0
        %v273 = vperm.slane %v237, 0
        %v274 = vperm.slane %v238, 0
        %v275 = vperm.slane %v239, 0
        %v276 = vperm.slane %v240, 0
        %v277 = vperm.slane %v241, 0
        %v278 = vperm.slane %v242, 0
        %v279 = vperm.slane %v243, 0
        %v280 = vperm.slane %v244, 0
        %v281 = vperm.slane %v245, 0
        %v282 = vperm.slane %v246, 0
        %v283 = vperm.slane %v247, 0
        %v284 = vperm.slane %v248, 0
        %v285 = vperm.slane %v249, 0
        %v286 = vperm.slane %v250, 0
        %v287 = vperm.slane %v251, 0
        %v288 = vadd.f32 %v226, %v270
        %v289 = vadd.f32 %v226, %v271
        %v290 = vadd.f32 %v226, %v272
        %v291 = vadd.f32 %v226, %v273
        %v292 = vadd.f32 %v226, %v274
        %v293 = vadd.f32 %v226, %v275
        %v294 = vadd.f32 %v226, %v276
        %v295 = vadd.f32 %v226, %v277
        %v296 = vadd.f32 %v226, %v278
        %v297 = vadd.f32 %v226, %v279
        %v298 = vadd.f32 %v226, %v280
        %v299 = vadd.f32 %v226, %v281
        %v300 = vadd.f32 %v226, %v282
        %v301 = vadd.f32 %v226, %v283
        %v302 = vadd.f32 %v226, %v284
        %v303 = vadd.f32 %v226, %v285
        %v304 = vadd.f32 %v226, %v286
        %v305 = vadd.f32 %v226, %v287
        %v306 = vadd.f32 %v227, %v270
        %v307 = vadd.f32 %v227, %v271
        %v308 = vadd.f32 %v227, %v272
        %v309 = vadd.f32 %v227, %v273
        %v310 = vadd.f32 %v227, %v274
        %v311 = vadd.f32 %v227, %v275
        %v312 = vadd.f32 %v227, %v276
        %v313 = vadd.f32 %v227, %v277
        %v314 = vadd.f32 %v227, %v278
        %v315 = vadd.f32 %v227, %v279
        %v316 = vadd.f32 %v227, %v280
        %v317 = vadd.f32 %v227, %v281
        %v318 = vadd.f32 %v227, %v282
        %v319 = vadd.f32 %v227, %v283
        %v320 = vadd.f32 %v227, %v284
        %v321 = vadd.f32 %v227, %v285
        %v322 = vadd.f32 %v227, %v286
        %v323 = vadd.f32 %v227, %v287
        %v324 = vadd.f32 %v228, %v270
        %v325 = vadd.f32 %v228, %v271
        %v326 = vadd.f32 %v228, %v272
        %v327 = vadd.f32 %v228, %v273
        %v328 = vadd.f32 %v228, %v274
        %v329 = vadd.f32 %v228, %v275
        %v330 = vadd.f32 %v228, %v276
        %v331 = vadd.f32 %v228, %v277
        %v332 = vadd.f32 %v228, %v278
        %v333 = vadd.f32 %v228, %v279
        %v334 = vadd.f32 %v228, %v280
        %v335 = vadd.f32 %v228, %v281
        %v336 = vadd.f32 %v228, %v282
        %v337 = vadd.f32 %v228, %v283
        %v338 = vadd.f32 %v228, %v284
        %v339 = vadd.f32 %v228, %v285
        %v340 = vadd.f32 %v228, %v286
        %v341 = vadd.f32 %v228, %v287
        %s342 = sld [smem:[#allocation2 + $0x3]]
        %s343 = sld [smem:[#allocation2 + $0x4]]
        %s344 = sld [smem:[#allocation2 + $0x5]]
        %v345 = vstv %s342
        %v346 = vsub.f32 %v345, %v164
        %v347 = vsub.f32 %v345, %v165
        %v348 = vsub.f32 %v345, %v166
        %v349 = vstv %s343
        %v350 = vsub.f32 %v349, %v167
        %v351 = vsub.f32 %v349, %v168
        %v352 = vsub.f32 %v349, %v169
        %v353 = vsub.f32 %v349, %v170
        %v354 = vsub.f32 %v349, %v171
        %v355 = vstv %s344
        %v356 = vsub.f32 %v355, %v167
        %v357 = vsub.f32 %v355, %v168
        %v358 = vsub.f32 %v355, %v169
        %v359 = vsub.f32 %v355, %v170
        %v360 = vsub.f32 %v355, %v171
        %v361 = vmul.f32 %v350, %v350
        %v362 = vmul.f32 %v351, %v351
        %v363 = vmul.f32 %v352, %v352
        %v364 = vmul.f32 %v353, %v353
        %v365 = vmul.f32 %v354, %v354
        %v366 = vmul.f32 %v356, %v356
        %v367 = vmul.f32 %v357, %v357
        %v368 = vmul.f32 %v358, %v358
        %v369 = vmul.f32 %v359, %v359
        %v370 = vmul.f32 %v360, %v360
        %v376 = vrot.slane %v366, 7
        %v377 = vrot.slane %v376, 2
        %v378 = vrot.slane %v367, 7
        %v379 = vrot.slane %v378, 2
        %v380 = vrot.slane %v368, 7
        %v381 = vrot.slane %v380, 2
        %v382 = vrot.slane %v369, 7
        %v383 = vrot.slane %v382, 2
        %v384 = vrot.slane %v370, 7
        %v385 = vrot.slane %v384, 2
        %v391 = vadd.f32 %v361, %v377
        %v392 = vadd.f32 %v362, %v379
        %v393 = vadd.f32 %v363, %v381
        %v394 = vadd.f32 %v364, %v383
        %v395 = vadd.f32 %v365, %v385
        %v396 = vmul.f32 %v346, %v346
        %v397 = vmul.f32 %v347, %v347
        %v398 = vmul.f32 %v348, %v348
        %v404 = vperm.slane %v391, 0
        %v405 = vperm.slane %v391, 2
        %v406 = vperm.slane %v391, 4
        %v407 = vperm.slane %v391, 6
        %v408 = vperm.slane %v392, 0
        %v409 = vperm.slane %v392, 2
        %v410 = vperm.slane %v392, 4
        %v411 = vperm.slane %v392, 6
        %v412 = vperm.slane %v393, 0
        %v413 = vperm.slane %v393, 2
        %v414 = vperm.slane %v393, 4
        %v415 = vperm.slane %v393, 6
        %v416 = vperm.slane %v394, 0
        %v417 = vperm.slane %v394, 2
        %v418 = vperm.slane %v394, 4
        %v419 = vperm.slane %v394, 6
        %v420 = vperm.slane %v395, 0
        %v421 = vperm.slane %v395, 2
        %v440 = vperm.slane %v404, 0
        %v441 = vperm.slane %v405, 0
        %v442 = vperm.slane %v406, 0
        %v443 = vperm.slane %v407, 0
        %v444 = vperm.slane %v408, 0
        %v445 = vperm.slane %v409, 0
        %v446 = vperm.slane %v410, 0
        %v447 = vperm.slane %v411, 0
        %v448 = vperm.slane %v412, 0
        %v449 = vperm.slane %v413, 0
        %v450 = vperm.slane %v414, 0
        %v451 = vperm.slane %v415, 0
        %v452 = vperm.slane %v416, 0
        %v453 = vperm.slane %v417, 0
        %v454 = vperm.slane %v418, 0
        %v455 = vperm.slane %v419, 0
        %v456 = vperm.slane %v420, 0
        %v457 = vperm.slane %v421, 0
        %v458 = vadd.f32 %v396, %v440
        %v459 = vadd.f32 %v396, %v441
        %v460 = vadd.f32 %v396, %v442
        %v461 = vadd.f32 %v396, %v443
        %v462 = vadd.f32 %v396, %v444
        %v463 = vadd.f32 %v396, %v445
        %v464 = vadd.f32 %v396, %v446
        %v465 = vadd.f32 %v396, %v447
        %v466 = vadd.f32 %v396, %v448
        %v467 = vadd.f32 %v396, %v449
        %v468 = vadd.f32 %v396, %v450
        %v469 = vadd.f32 %v396, %v451
        %v470 = vadd.f32 %v396, %v452
        %v471 = vadd.f32 %v396, %v453
        %v472 = vadd.f32 %v396, %v454
        %v473 = vadd.f32 %v396, %v455
        %v474 = vadd.f32 %v396, %v456
        %v475 = vadd.f32 %v396, %v457
        %v476 = vadd.f32 %v397, %v440
        %v477 = vadd.f32 %v397, %v441
        %v478 = vadd.f32 %v397, %v442
        %v479 = vadd.f32 %v397, %v443
        %v480 = vadd.f32 %v397, %v444
        %v481 = vadd.f32 %v397, %v445
        %v482 = vadd.f32 %v397, %v446
        %v483 = vadd.f32 %v397, %v447
        %v484 = vadd.f32 %v397, %v448
        %v485 = vadd.f32 %v397, %v449
        %v486 = vadd.f32 %v397, %v450
        %v487 = vadd.f32 %v397, %v451
        %v488 = vadd.f32 %v397, %v452
        %v489 = vadd.f32 %v397, %v453
        %v490 = vadd.f32 %v397, %v454
        %v491 = vadd.f32 %v397, %v455
        %v492 = vadd.f32 %v397, %v456
        %v493 = vadd.f32 %v397, %v457
        %v494 = vadd.f32 %v398, %v440
        %v495 = vadd.f32 %v398, %v441
        %v496 = vadd.f32 %v398, %v442
        %v497 = vadd.f32 %v398, %v443
        %v498 = vadd.f32 %v398, %v444
        %v499 = vadd.f32 %v398, %v445
        %v500 = vadd.f32 %v398, %v446
        %v501 = vadd.f32 %v398, %v447
        %v502 = vadd.f32 %v398, %v448
        %v503 = vadd.f32 %v398, %v449
        %v504 = vadd.f32 %v398, %v450
        %v505 = vadd.f32 %v398, %v451
        %v506 = vadd.f32 %v398, %v452
        %v507 = vadd.f32 %v398, %v453
        %v508 = vadd.f32 %v398, %v454
        %v509 = vadd.f32 %v398, %v455
        %v510 = vadd.f32 %v398, %v456
        %v511 = vadd.f32 %v398, %v457
        %v512 = vmin.f32 %v288, %v458
        %v513 = vmin.f32 %v289, %v459
        %v514 = vmin.f32 %v290, %v460
        %v515 = vmin.f32 %v291, %v461
        %v516 = vmin.f32 %v292, %v462
        %v517 = vmin.f32 %v293, %v463
        %v518 = vmin.f32 %v294, %v464
        %v519 = vmin.f32 %v295, %v465
        %v520 = vmin.f32 %v296, %v466
        %v521 = vmin.f32 %v297, %v467
        %v522 = vmin.f32 %v298, %v468
        %v523 = vmin.f32 %v299, %v469
        %v524 = vmin.f32 %v300, %v470
        %v525 = vmin.f32 %v301, %v471
        %v526 = vmin.f32 %v302, %v472
        %v527 = vmin.f32 %v303, %v473
        %v528 = vmin.f32 %v304, %v474
        %v529 = vmin.f32 %v305, %v475
        %v530 = vmin.f32 %v306, %v476
        %v531 = vmin.f32 %v307, %v477
        %v532 = vmin.f32 %v308, %v478
        %v533 = vmin.f32 %v309, %v479
        %v534 = vmin.f32 %v310, %v480
        %v535 = vmin.f32 %v311, %v481
        %v536 = vmin.f32 %v312, %v482
        %v537 = vmin.f32 %v313, %v483
        %v538 = vmin.f32 %v314, %v484
        %v539 = vmin.f32 %v315, %v485
        %v540 = vmin.f32 %v316, %v486
        %v541 = vmin.f32 %v317, %v487
        %v542 = vmin.f32 %v318, %v488
        %v543 = vmin.f32 %v319, %v489
        %v544 = vmin.f32 %v320, %v490
        %v545 = vmin.f32 %v321, %v491
        %v546 = vmin.f32 %v322, %v492
        %v547 = vmin.f32 %v323, %v493
        %v548 = vmin.f32 %v324, %v494
        %v549 = vmin.f32 %v325, %v495
        %v550 = vmin.f32 %v326, %v496
        %v551 = vmin.f32 %v327, %v497
        %v552 = vmin.f32 %v328, %v498
        %v553 = vmin.f32 %v329, %v499
        %v554 = vmin.f32 %v330, %v500
        %v555 = vmin.f32 %v331, %v501
        %v556 = vmin.f32 %v332, %v502
        %v557 = vmin.f32 %v333, %v503
        %v558 = vmin.f32 %v334, %v504
        %v559 = vmin.f32 %v335, %v505
        %v560 = vmin.f32 %v336, %v506
        %v561 = vmin.f32 %v337, %v507
        %v562 = vmin.f32 %v338, %v508
        %v563 = vmin.f32 %v339, %v509
        %v564 = vmin.f32 %v340, %v510
        %v565 = vmin.f32 %v341, %v511
        %s566 = sld [smem:[#allocation2 + $0x6]]
        %s567 = sld [smem:[#allocation2 + $0x7]]
        %s568 = sld [smem:[#allocation2 + $0x8]]
        %v569 = vstv %s566
        %v570 = vsub.f32 %v569, %v164
        %v571 = vsub.f32 %v569, %v165
        %v572 = vsub.f32 %v569, %v166
        %v573 = vstv %s567
        %v574 = vsub.f32 %v573, %v167
        %v575 = vsub.f32 %v573, %v168
        %v576 = vsub.f32 %v573, %v169
        %v577 = vsub.f32 %v573, %v170
        %v578 = vsub.f32 %v573, %v171
        %v579 = vstv %s568
        %v580 = vsub.f32 %v579, %v167
        %v581 = vsub.f32 %v579, %v168
        %v582 = vsub.f32 %v579, %v169
        %v583 = vsub.f32 %v579, %v170
        %v584 = vsub.f32 %v579, %v171
        %v585 = vmul.f32 %v574, %v574
        %v586 = vmul.f32 %v575, %v575
        %v587 = vmul.f32 %v576, %v576
        %v588 = vmul.f32 %v577, %v577
        %v589 = vmul.f32 %v578, %v578
        %v590 = vmul.f32 %v580, %v580
        %v591 = vmul.f32 %v581, %v581
        %v592 = vmul.f32 %v582, %v582
        %v593 = vmul.f32 %v583, %v583
        %v594 = vmul.f32 %v584, %v584
        %v600 = vrot.slane %v590, 7
        %v601 = vrot.slane %v600, 2
        %v602 = vrot.slane %v591, 7
        %v603 = vrot.slane %v602, 2
        %v604 = vrot.slane %v592, 7
        %v605 = vrot.slane %v604, 2
        %v606 = vrot.slane %v593, 7
        %v607 = vrot.slane %v606, 2
        %v608 = vrot.slane %v594, 7
        %v609 = vrot.slane %v608, 2
        %v615 = vadd.f32 %v585, %v601
        %v616 = vadd.f32 %v586, %v603
        %v617 = vadd.f32 %v587, %v605
        %v618 = vadd.f32 %v588, %v607
        %v619 = vadd.f32 %v589, %v609
        %v620 = vmul.f32 %v570, %v570
        %v621 = vmul.f32 %v571, %v571
        %v622 = vmul.f32 %v572, %v572
        %v628 = vperm.slane %v615, 0
        %v629 = vperm.slane %v615, 2
        %v630 = vperm.slane %v615, 4
        %v631 = vperm.slane %v615, 6
        %v632 = vperm.slane %v616, 0
        %v633 = vperm.slane %v616, 2
        %v634 = vperm.slane %v616, 4
        %v635 = vperm.slane %v616, 6
        %v636 = vperm.slane %v617, 0
        %v637 = vperm.slane %v617, 2
        %v638 = vperm.slane %v617, 4
        %v639 = vperm.slane %v617, 6
        %v640 = vperm.slane %v618, 0
        %v641 = vperm.slane %v618, 2
        %v642 = vperm.slane %v618, 4
        %v643 = vperm.slane %v618, 6
        %v644 = vperm.slane %v619, 0
        %v645 = vperm.slane %v619, 2
        %v664 = vperm.slane %v628, 0
        %v665 = vperm.slane %v629, 0
        %v666 = vperm.slane %v630, 0
        %v667 = vperm.slane %v631, 0
        %v668 = vperm.slane %v632, 0
        %v669 = vperm.slane %v633, 0
        %v670 = vperm.slane %v634, 0
        %v671 = vperm.slane %v635, 0
        %v672 = vperm.slane %v636, 0
        %v673 = vperm.slane %v637, 0
        %v674 = vperm.slane %v638, 0
        %v675 = vperm.slane %v639, 0
        %v676 = vperm.slane %v640, 0
        %v677 = vperm.slane %v641, 0
        %v678 = vperm.slane %v642, 0
        %v679 = vperm.slane %v643, 0
        %v680 = vperm.slane %v644, 0
        %v681 = vperm.slane %v645, 0
        %v682 = vadd.f32 %v620, %v664
        %v683 = vadd.f32 %v620, %v665
        %v684 = vadd.f32 %v620, %v666
        %v685 = vadd.f32 %v620, %v667
        %v686 = vadd.f32 %v620, %v668
        %v687 = vadd.f32 %v620, %v669
        %v688 = vadd.f32 %v620, %v670
        %v689 = vadd.f32 %v620, %v671
        %v690 = vadd.f32 %v620, %v672
        %v691 = vadd.f32 %v620, %v673
        %v692 = vadd.f32 %v620, %v674
        %v693 = vadd.f32 %v620, %v675
        %v694 = vadd.f32 %v620, %v676
        %v695 = vadd.f32 %v620, %v677
        %v696 = vadd.f32 %v620, %v678
        %v697 = vadd.f32 %v620, %v679
        %v698 = vadd.f32 %v620, %v680
        %v699 = vadd.f32 %v620, %v681
        %v700 = vadd.f32 %v621, %v664
        %v701 = vadd.f32 %v621, %v665
        %v702 = vadd.f32 %v621, %v666
        %v703 = vadd.f32 %v621, %v667
        %v704 = vadd.f32 %v621, %v668
        %v705 = vadd.f32 %v621, %v669
        %v706 = vadd.f32 %v621, %v670
        %v707 = vadd.f32 %v621, %v671
        %v708 = vadd.f32 %v621, %v672
        %v709 = vadd.f32 %v621, %v673
        %v710 = vadd.f32 %v621, %v674
        %v711 = vadd.f32 %v621, %v675
        %v712 = vadd.f32 %v621, %v676
        %v713 = vadd.f32 %v621, %v677
        %v714 = vadd.f32 %v621, %v678
        %v715 = vadd.f32 %v621, %v679
        %v716 = vadd.f32 %v621, %v680
        %v717 = vadd.f32 %v621, %v681
        %v718 = vadd.f32 %v622, %v664
        %v719 = vadd.f32 %v622, %v665
        %v720 = vadd.f32 %v622, %v666
        %v721 = vadd.f32 %v622, %v667
        %v722 = vadd.f32 %v622, %v668
        %v723 = vadd.f32 %v622, %v669
        %v724 = vadd.f32 %v622, %v670
        %v725 = vadd.f32 %v622, %v671
        %v726 = vadd.f32 %v622, %v672
        %v727 = vadd.f32 %v622, %v673
        %v728 = vadd.f32 %v622, %v674
        %v729 = vadd.f32 %v622, %v675
        %v730 = vadd.f32 %v622, %v676
        %v731 = vadd.f32 %v622, %v677
        %v732 = vadd.f32 %v622, %v678
        %v733 = vadd.f32 %v622, %v679
        %v734 = vadd.f32 %v622, %v680
        %v735 = vadd.f32 %v622, %v681
        %v736 = vmin.f32 %v512, %v682
        %v737 = vmin.f32 %v513, %v683
        %v738 = vmin.f32 %v514, %v684
        %v739 = vmin.f32 %v515, %v685
        %v740 = vmin.f32 %v516, %v686
        %v741 = vmin.f32 %v517, %v687
        %v742 = vmin.f32 %v518, %v688
        %v743 = vmin.f32 %v519, %v689
        %v744 = vmin.f32 %v520, %v690
        %v745 = vmin.f32 %v521, %v691
        %v746 = vmin.f32 %v522, %v692
        %v747 = vmin.f32 %v523, %v693
        %v748 = vmin.f32 %v524, %v694
        %v749 = vmin.f32 %v525, %v695
        %v750 = vmin.f32 %v526, %v696
        %v751 = vmin.f32 %v527, %v697
        %v752 = vmin.f32 %v528, %v698
        %v753 = vmin.f32 %v529, %v699
        %v754 = vmin.f32 %v530, %v700
        %v755 = vmin.f32 %v531, %v701
        %v756 = vmin.f32 %v532, %v702
        %v757 = vmin.f32 %v533, %v703
        %v758 = vmin.f32 %v534, %v704
        %v759 = vmin.f32 %v535, %v705
        %v760 = vmin.f32 %v536, %v706
        %v761 = vmin.f32 %v537, %v707
        %v762 = vmin.f32 %v538, %v708
        %v763 = vmin.f32 %v539, %v709
        %v764 = vmin.f32 %v540, %v710
        %v765 = vmin.f32 %v541, %v711
        %v766 = vmin.f32 %v542, %v712
        %v767 = vmin.f32 %v543, %v713
        %v768 = vmin.f32 %v544, %v714
        %v769 = vmin.f32 %v545, %v715
        %v770 = vmin.f32 %v546, %v716
        %v771 = vmin.f32 %v547, %v717
        %v772 = vmin.f32 %v548, %v718
        %v773 = vmin.f32 %v549, %v719
        %v774 = vmin.f32 %v550, %v720
        %v775 = vmin.f32 %v551, %v721
        %v776 = vmin.f32 %v552, %v722
        %v777 = vmin.f32 %v553, %v723
        %v778 = vmin.f32 %v554, %v724
        %v779 = vmin.f32 %v555, %v725
        %v780 = vmin.f32 %v556, %v726
        %v781 = vmin.f32 %v557, %v727
        %v782 = vmin.f32 %v558, %v728
        %v783 = vmin.f32 %v559, %v729
        %v784 = vmin.f32 %v560, %v730
        %v785 = vmin.f32 %v561, %v731
        %v786 = vmin.f32 %v562, %v732
        %v787 = vmin.f32 %v563, %v733
        %v788 = vmin.f32 %v564, %v734
        %v789 = vmin.f32 %v565, %v735
        %s790 = sld [smem:[#allocation2 + $0x9]]
        %s791 = sld [smem:[#allocation2 + $0xa]]
        %s792 = sld [smem:[#allocation2 + $0xb]]
        %v793 = vstv %s790
        %v794 = vsub.f32 %v793, %v164
        %v795 = vsub.f32 %v793, %v165
        %v796 = vsub.f32 %v793, %v166
        %v797 = vstv %s791
        %v798 = vsub.f32 %v797, %v167
        %v799 = vsub.f32 %v797, %v168
        %v800 = vsub.f32 %v797, %v169
        %v801 = vsub.f32 %v797, %v170
        %v802 = vsub.f32 %v797, %v171
        %v803 = vstv %s792
        %v804 = vsub.f32 %v803, %v167
        %v805 = vsub.f32 %v803, %v168
        %v806 = vsub.f32 %v803, %v169
        %v807 = vsub.f32 %v803, %v170
        %v808 = vsub.f32 %v803, %v171
        %v809 = vmul.f32 %v798, %v798
        %v810 = vmul.f32 %v799, %v799
        %v811 = vmul.f32 %v800, %v800
        %v812 = vmul.f32 %v801, %v801
        %v813 = vmul.f32 %v802, %v802
        %v814 = vmul.f32 %v804, %v804
        %v815 = vmul.f32 %v805, %v805
        %v816 = vmul.f32 %v806, %v806
        %v817 = vmul.f32 %v807, %v807
        %v818 = vmul.f32 %v808, %v808
        %v824 = vrot.slane %v814, 7
        %v825 = vrot.slane %v824, 2
        %v826 = vrot.slane %v815, 7
        %v827 = vrot.slane %v826, 2
        %v828 = vrot.slane %v816, 7
        %v829 = vrot.slane %v828, 2
        %v830 = vrot.slane %v817, 7
        %v831 = vrot.slane %v830, 2
        %v832 = vrot.slane %v818, 7
        %v833 = vrot.slane %v832, 2
        %v839 = vadd.f32 %v809, %v825
        %v840 = vadd.f32 %v810, %v827
        %v841 = vadd.f32 %v811, %v829
        %v842 = vadd.f32 %v812, %v831
        %v843 = vadd.f32 %v813, %v833
        %v844 = vmul.f32 %v794, %v794
        %v845 = vmul.f32 %v795, %v795
        %v846 = vmul.f32 %v796, %v796
        %v852 = vperm.slane %v839, 0
        %v853 = vperm.slane %v839, 2
        %v854 = vperm.slane %v839, 4
        %v855 = vperm.slane %v839, 6
        %v856 = vperm.slane %v840, 0
        %v857 = vperm.slane %v840, 2
        %v858 = vperm.slane %v840, 4
        %v859 = vperm.slane %v840, 6
        %v860 = vperm.slane %v841, 0
        %v861 = vperm.slane %v841, 2
        %v862 = vperm.slane %v841, 4
        %v863 = vperm.slane %v841, 6
        %v864 = vperm.slane %v842, 0
        %v865 = vperm.slane %v842, 2
        %v866 = vperm.slane %v842, 4
        %v867 = vperm.slane %v842, 6
        %v868 = vperm.slane %v843, 0
        %v869 = vperm.slane %v843, 2
        %v888 = vperm.slane %v852, 0
        %v889 = vperm.slane %v853, 0
        %v890 = vperm.slane %v854, 0
        %v891 = vperm.slane %v855, 0
        %v892 = vperm.slane %v856, 0
        %v893 = vperm.slane %v857, 0
        %v894 = vperm.slane %v858, 0
        %v895 = vperm.slane %v859, 0
        %v896 = vperm.slane %v860, 0
        %v897 = vperm.slane %v861, 0
        %v898 = vperm.slane %v862, 0
        %v899 = vperm.slane %v863, 0
        %v900 = vperm.slane %v864, 0
        %v901 = vperm.slane %v865, 0
        %v902 = vperm.slane %v866, 0
        %v903 = vperm.slane %v867, 0
        %v904 = vperm.slane %v868, 0
        %v905 = vperm.slane %v869, 0
        %v906 = vadd.f32 %v844, %v888
        %v907 = vadd.f32 %v844, %v889
        %v908 = vadd.f32 %v844, %v890
        %v909 = vadd.f32 %v844, %v891
        %v910 = vadd.f32 %v844, %v892
        %v911 = vadd.f32 %v844, %v893
        %v912 = vadd.f32 %v844, %v894
        %v913 = vadd.f32 %v844, %v895
        %v914 = vadd.f32 %v844, %v896
        %v915 = vadd.f32 %v844, %v897
        %v916 = vadd.f32 %v844, %v898
        %v917 = vadd.f32 %v844, %v899
        %v918 = vadd.f32 %v844, %v900
        %v919 = vadd.f32 %v844, %v901
        %v920 = vadd.f32 %v844, %v902
        %v921 = vadd.f32 %v844, %v903
        %v922 = vadd.f32 %v844, %v904
        %v923 = vadd.f32 %v844, %v905
        %v924 = vadd.f32 %v845, %v888
        %v925 = vadd.f32 %v845, %v889
        %v926 = vadd.f32 %v845, %v890
        %v927 = vadd.f32 %v845, %v891
        %v928 = vadd.f32 %v845, %v892
        %v929 = vadd.f32 %v845, %v893
        %v930 = vadd.f32 %v845, %v894
        %v931 = vadd.f32 %v845, %v895
        %v932 = vadd.f32 %v845, %v896
        %v933 = vadd.f32 %v845, %v897
        %v934 = vadd.f32 %v845, %v898
        %v935 = vadd.f32 %v845, %v899
        %v936 = vadd.f32 %v845, %v900
        %v937 = vadd.f32 %v845, %v901
        %v938 = vadd.f32 %v845, %v902
        %v939 = vadd.f32 %v845, %v903
        %v940 = vadd.f32 %v845, %v904
        %v941 = vadd.f32 %v845, %v905
        %v942 = vadd.f32 %v846, %v888
        %v943 = vadd.f32 %v846, %v889
        %v944 = vadd.f32 %v846, %v890
        %v945 = vadd.f32 %v846, %v891
        %v946 = vadd.f32 %v846, %v892
        %v947 = vadd.f32 %v846, %v893
        %v948 = vadd.f32 %v846, %v894
        %v949 = vadd.f32 %v846, %v895
        %v950 = vadd.f32 %v846, %v896
        %v951 = vadd.f32 %v846, %v897
        %v952 = vadd.f32 %v846, %v898
        %v953 = vadd.f32 %v846, %v899
        %v954 = vadd.f32 %v846, %v900
        %v955 = vadd.f32 %v846, %v901
        %v956 = vadd.f32 %v846, %v902
        %v957 = vadd.f32 %v846, %v903
        %v958 = vadd.f32 %v846, %v904
        %v959 = vadd.f32 %v846, %v905
        %v960 = vmin.f32 %v736, %v906
        %v961 = vmin.f32 %v737, %v907
        %v962 = vmin.f32 %v738, %v908
        %v963 = vmin.f32 %v739, %v909
        %v964 = vmin.f32 %v740, %v910
        %v965 = vmin.f32 %v741, %v911
        %v966 = vmin.f32 %v742, %v912
        %v967 = vmin.f32 %v743, %v913
        %v968 = vmin.f32 %v744, %v914
        %v969 = vmin.f32 %v745, %v915
        %v970 = vmin.f32 %v746, %v916
        %v971 = vmin.f32 %v747, %v917
        %v972 = vmin.f32 %v748, %v918
        %v973 = vmin.f32 %v749, %v919
        %v974 = vmin.f32 %v750, %v920
        %v975 = vmin.f32 %v751, %v921
        %v976 = vmin.f32 %v752, %v922
        %v977 = vmin.f32 %v753, %v923
        %v978 = vmin.f32 %v754, %v924
        %v979 = vmin.f32 %v755, %v925
        %v980 = vmin.f32 %v756, %v926
        %v981 = vmin.f32 %v757, %v927
        %v982 = vmin.f32 %v758, %v928
        %v983 = vmin.f32 %v759, %v929
        %v984 = vmin.f32 %v760, %v930
        %v985 = vmin.f32 %v761, %v931
        %v986 = vmin.f32 %v762, %v932
        %v987 = vmin.f32 %v763, %v933
        %v988 = vmin.f32 %v764, %v934
        %v989 = vmin.f32 %v765, %v935
        %v990 = vmin.f32 %v766, %v936
        %v991 = vmin.f32 %v767, %v937
        %v992 = vmin.f32 %v768, %v938
        %v993 = vmin.f32 %v769, %v939
        %v994 = vmin.f32 %v770, %v940
        %v995 = vmin.f32 %v771, %v941
        %v996 = vmin.f32 %v772, %v942
        %v997 = vmin.f32 %v773, %v943
        %v998 = vmin.f32 %v774, %v944
        %v999 = vmin.f32 %v775, %v945
        %v1000 = vmin.f32 %v776, %v946
        %v1001 = vmin.f32 %v777, %v947
        %v1002 = vmin.f32 %v778, %v948
        %v1003 = vmin.f32 %v779, %v949
        %v1004 = vmin.f32 %v780, %v950
        %v1005 = vmin.f32 %v781, %v951
        %v1006 = vmin.f32 %v782, %v952
        %v1007 = vmin.f32 %v783, %v953
        %v1008 = vmin.f32 %v784, %v954
        %v1009 = vmin.f32 %v785, %v955
        %v1010 = vmin.f32 %v786, %v956
        %v1011 = vmin.f32 %v787, %v957
        %v1012 = vmin.f32 %v788, %v958
        %v1013 = vmin.f32 %v789, %v959
        %s1014 = sld [smem:[#allocation2 + $0xc]]
        %s1015 = sld [smem:[#allocation2 + $0xd]]
        %s1016 = sld [smem:[#allocation2 + $0xe]]
        %v1017 = vstv %s1014
        %v1018 = vsub.f32 %v1017, %v164
        %v1019 = vsub.f32 %v1017, %v165
        %v1020 = vsub.f32 %v1017, %v166
        %v1021 = vstv %s1015
        %v1022 = vsub.f32 %v1021, %v167
        %v1023 = vsub.f32 %v1021, %v168
        %v1024 = vsub.f32 %v1021, %v169
        %v1025 = vsub.f32 %v1021, %v170
        %v1026 = vsub.f32 %v1021, %v171
        %v1027 = vstv %s1016
        %v1028 = vsub.f32 %v1027, %v167
        %v1029 = vsub.f32 %v1027, %v168
        %v1030 = vsub.f32 %v1027, %v169
        %v1031 = vsub.f32 %v1027, %v170
        %v1032 = vsub.f32 %v1027, %v171
        %v1033 = vmul.f32 %v1022, %v1022
        %v1034 = vmul.f32 %v1023, %v1023
        %v1035 = vmul.f32 %v1024, %v1024
        %v1036 = vmul.f32 %v1025, %v1025
        %v1037 = vmul.f32 %v1026, %v1026
        %v1038 = vmul.f32 %v1028, %v1028
        %v1039 = vmul.f32 %v1029, %v1029
        %v1040 = vmul.f32 %v1030, %v1030
        %v1041 = vmul.f32 %v1031, %v1031
        %v1042 = vmul.f32 %v1032, %v1032
        %v1048 = vrot.slane %v1038, 7
        %v1049 = vrot.slane %v1048, 2
        %v1050 = vrot.slane %v1039, 7
        %v1051 = vrot.slane %v1050, 2
        %v1052 = vrot.slane %v1040, 7
        %v1053 = vrot.slane %v1052, 2
        %v1054 = vrot.slane %v1041, 7
        %v1055 = vrot.slane %v1054, 2
        %v1056 = vrot.slane %v1042, 7
        %v1057 = vrot.slane %v1056, 2
        %v1063 = vadd.f32 %v1033, %v1049
        %v1064 = vadd.f32 %v1034, %v1051
        %v1065 = vadd.f32 %v1035, %v1053
        %v1066 = vadd.f32 %v1036, %v1055
        %v1067 = vadd.f32 %v1037, %v1057
        %v1068 = vmul.f32 %v1018, %v1018
        %v1069 = vmul.f32 %v1019, %v1019
        %v1070 = vmul.f32 %v1020, %v1020
        %v1076 = vperm.slane %v1063, 0
        %v1077 = vperm.slane %v1063, 2
        %v1078 = vperm.slane %v1063, 4
        %v1079 = vperm.slane %v1063, 6
        %v1080 = vperm.slane %v1064, 0
        %v1081 = vperm.slane %v1064, 2
        %v1082 = vperm.slane %v1064, 4
        %v1083 = vperm.slane %v1064, 6
        %v1084 = vperm.slane %v1065, 0
        %v1085 = vperm.slane %v1065, 2
        %v1086 = vperm.slane %v1065, 4
        %v1087 = vperm.slane %v1065, 6
        %v1088 = vperm.slane %v1066, 0
        %v1089 = vperm.slane %v1066, 2
        %v1090 = vperm.slane %v1066, 4
        %v1091 = vperm.slane %v1066, 6
        %v1092 = vperm.slane %v1067, 0
        %v1093 = vperm.slane %v1067, 2
        %v1112 = vperm.slane %v1076, 0
        %v1113 = vperm.slane %v1077, 0
        %v1114 = vperm.slane %v1078, 0
        %v1115 = vperm.slane %v1079, 0
        %v1116 = vperm.slane %v1080, 0
        %v1117 = vperm.slane %v1081, 0
        %v1118 = vperm.slane %v1082, 0
        %v1119 = vperm.slane %v1083, 0
        %v1120 = vperm.slane %v1084, 0
        %v1121 = vperm.slane %v1085, 0
        %v1122 = vperm.slane %v1086, 0
        %v1123 = vperm.slane %v1087, 0
        %v1124 = vperm.slane %v1088, 0
        %v1125 = vperm.slane %v1089, 0
        %v1126 = vperm.slane %v1090, 0
        %v1127 = vperm.slane %v1091, 0
        %v1128 = vperm.slane %v1092, 0
        %v1129 = vperm.slane %v1093, 0
        %v1130 = vadd.f32 %v1068, %v1112
        %v1131 = vadd.f32 %v1068, %v1113
        %v1132 = vadd.f32 %v1068, %v1114
        %v1133 = vadd.f32 %v1068, %v1115
        %v1134 = vadd.f32 %v1068, %v1116
        %v1135 = vadd.f32 %v1068, %v1117
        %v1136 = vadd.f32 %v1068, %v1118
        %v1137 = vadd.f32 %v1068, %v1119
        %v1138 = vadd.f32 %v1068, %v1120
        %v1139 = vadd.f32 %v1068, %v1121
        %v1140 = vadd.f32 %v1068, %v1122
        %v1141 = vadd.f32 %v1068, %v1123
        %v1142 = vadd.f32 %v1068, %v1124
        %v1143 = vadd.f32 %v1068, %v1125
        %v1144 = vadd.f32 %v1068, %v1126
        %v1145 = vadd.f32 %v1068, %v1127
        %v1146 = vadd.f32 %v1068, %v1128
        %v1147 = vadd.f32 %v1068, %v1129
        %v1148 = vadd.f32 %v1069, %v1112
        %v1149 = vadd.f32 %v1069, %v1113
        %v1150 = vadd.f32 %v1069, %v1114
        %v1151 = vadd.f32 %v1069, %v1115
        %v1152 = vadd.f32 %v1069, %v1116
        %v1153 = vadd.f32 %v1069, %v1117
        %v1154 = vadd.f32 %v1069, %v1118
        %v1155 = vadd.f32 %v1069, %v1119
        %v1156 = vadd.f32 %v1069, %v1120
        %v1157 = vadd.f32 %v1069, %v1121
        %v1158 = vadd.f32 %v1069, %v1122
        %v1159 = vadd.f32 %v1069, %v1123
        %v1160 = vadd.f32 %v1069, %v1124
        %v1161 = vadd.f32 %v1069, %v1125
        %v1162 = vadd.f32 %v1069, %v1126
        %v1163 = vadd.f32 %v1069, %v1127
        %v1164 = vadd.f32 %v1069, %v1128
        %v1165 = vadd.f32 %v1069, %v1129
        %v1166 = vadd.f32 %v1070, %v1112
        %v1167 = vadd.f32 %v1070, %v1113
        %v1168 = vadd.f32 %v1070, %v1114
        %v1169 = vadd.f32 %v1070, %v1115
        %v1170 = vadd.f32 %v1070, %v1116
        %v1171 = vadd.f32 %v1070, %v1117
        %v1172 = vadd.f32 %v1070, %v1118
        %v1173 = vadd.f32 %v1070, %v1119
        %v1174 = vadd.f32 %v1070, %v1120
        %v1175 = vadd.f32 %v1070, %v1121
        %v1176 = vadd.f32 %v1070, %v1122
        %v1177 = vadd.f32 %v1070, %v1123
        %v1178 = vadd.f32 %v1070, %v1124
        %v1179 = vadd.f32 %v1070, %v1125
        %v1180 = vadd.f32 %v1070, %v1126
        %v1181 = vadd.f32 %v1070, %v1127
        %v1182 = vadd.f32 %v1070, %v1128
        %v1183 = vadd.f32 %v1070, %v1129
        %v1184 = vmin.f32 %v960, %v1130
        %v1185 = vmin.f32 %v961, %v1131
        %v1186 = vmin.f32 %v962, %v1132
        %v1187 = vmin.f32 %v963, %v1133
        %v1188 = vmin.f32 %v964, %v1134
        %v1189 = vmin.f32 %v965, %v1135
        %v1190 = vmin.f32 %v966, %v1136
        %v1191 = vmin.f32 %v967, %v1137
        %v1192 = vmin.f32 %v968, %v1138
        %v1193 = vmin.f32 %v969, %v1139
        %v1194 = vmin.f32 %v970, %v1140
        %v1195 = vmin.f32 %v971, %v1141
        %v1196 = vmin.f32 %v972, %v1142
        %v1197 = vmin.f32 %v973, %v1143
        %v1198 = vmin.f32 %v974, %v1144
        %v1199 = vmin.f32 %v975, %v1145
        %v1200 = vmin.f32 %v976, %v1146
        %v1201 = vmin.f32 %v977, %v1147
        %v1202 = vmin.f32 %v978, %v1148
        %v1203 = vmin.f32 %v979, %v1149
        %v1204 = vmin.f32 %v980, %v1150
        %v1205 = vmin.f32 %v981, %v1151
        %v1206 = vmin.f32 %v982, %v1152
        %v1207 = vmin.f32 %v983, %v1153
        %v1208 = vmin.f32 %v984, %v1154
        %v1209 = vmin.f32 %v985, %v1155
        %v1210 = vmin.f32 %v986, %v1156
        %v1211 = vmin.f32 %v987, %v1157
        %v1212 = vmin.f32 %v988, %v1158
        %v1213 = vmin.f32 %v989, %v1159
        %v1214 = vmin.f32 %v990, %v1160
        %v1215 = vmin.f32 %v991, %v1161
        %v1216 = vmin.f32 %v992, %v1162
        %v1217 = vmin.f32 %v993, %v1163
        %v1218 = vmin.f32 %v994, %v1164
        %v1219 = vmin.f32 %v995, %v1165
        %v1220 = vmin.f32 %v996, %v1166
        %v1221 = vmin.f32 %v997, %v1167
        %v1222 = vmin.f32 %v998, %v1168
        %v1223 = vmin.f32 %v999, %v1169
        %v1224 = vmin.f32 %v1000, %v1170
        %v1225 = vmin.f32 %v1001, %v1171
        %v1226 = vmin.f32 %v1002, %v1172
        %v1227 = vmin.f32 %v1003, %v1173
        %v1228 = vmin.f32 %v1004, %v1174
        %v1229 = vmin.f32 %v1005, %v1175
        %v1230 = vmin.f32 %v1006, %v1176
        %v1231 = vmin.f32 %v1007, %v1177
        %v1232 = vmin.f32 %v1008, %v1178
        %v1233 = vmin.f32 %v1009, %v1179
        %v1234 = vmin.f32 %v1010, %v1180
        %v1235 = vmin.f32 %v1011, %v1181
        %v1236 = vmin.f32 %v1012, %v1182
        %v1237 = vmin.f32 %v1013, %v1183
        %s1238 = sld [smem:[#allocation2 + $0xf]]
        %s1239 = sld [smem:[#allocation2 + $0x10]]
        %s1240 = sld [smem:[#allocation2 + $0x11]]
        %v1241 = vstv %s1238
        %v1242 = vsub.f32 %v1241, %v164
        %v1243 = vsub.f32 %v1241, %v165
        %v1244 = vsub.f32 %v1241, %v166
        %v1245 = vstv %s1239
        %v1246 = vsub.f32 %v1245, %v167
        %v1247 = vsub.f32 %v1245, %v168
        %v1248 = vsub.f32 %v1245, %v169
        %v1249 = vsub.f32 %v1245, %v170
        %v1250 = vsub.f32 %v1245, %v171
        %v1251 = vstv %s1240
        %v1252 = vsub.f32 %v1251, %v167
        %v1253 = vsub.f32 %v1251, %v168
        %v1254 = vsub.f32 %v1251, %v169
        %v1255 = vsub.f32 %v1251, %v170
        %v1256 = vsub.f32 %v1251, %v171
        %v1257 = vmul.f32 %v1246, %v1246
        %v1258 = vmul.f32 %v1247, %v1247
        %v1259 = vmul.f32 %v1248, %v1248
        %v1260 = vmul.f32 %v1249, %v1249
        %v1261 = vmul.f32 %v1250, %v1250
        %v1262 = vmul.f32 %v1252, %v1252
        %v1263 = vmul.f32 %v1253, %v1253
        %v1264 = vmul.f32 %v1254, %v1254
        %v1265 = vmul.f32 %v1255, %v1255
        %v1266 = vmul.f32 %v1256, %v1256
        %v1272 = vrot.slane %v1262, 7
        %v1273 = vrot.slane %v1272, 2
        %v1274 = vrot.slane %v1263, 7
        %v1275 = vrot.slane %v1274, 2
        %v1276 = vrot.slane %v1264, 7
        %v1277 = vrot.slane %v1276, 2
        %v1278 = vrot.slane %v1265, 7
        %v1279 = vrot.slane %v1278, 2
        %v1280 = vrot.slane %v1266, 7
        %v1281 = vrot.slane %v1280, 2
        %v1287 = vadd.f32 %v1257, %v1273
        %v1288 = vadd.f32 %v1258, %v1275
        %v1289 = vadd.f32 %v1259, %v1277
        %v1290 = vadd.f32 %v1260, %v1279
        %v1291 = vadd.f32 %v1261, %v1281
        %v1292 = vmul.f32 %v1242, %v1242
        %v1293 = vmul.f32 %v1243, %v1243
        %v1294 = vmul.f32 %v1244, %v1244
        %v1300 = vperm.slane %v1287, 0
        %v1301 = vperm.slane %v1287, 2
        %v1302 = vperm.slane %v1287, 4
        %v1303 = vperm.slane %v1287, 6
        %v1304 = vperm.slane %v1288, 0
        %v1305 = vperm.slane %v1288, 2
        %v1306 = vperm.slane %v1288, 4
        %v1307 = vperm.slane %v1288, 6
        %v1308 = vperm.slane %v1289, 0
        %v1309 = vperm.slane %v1289, 2
        %v1310 = vperm.slane %v1289, 4
        %v1311 = vperm.slane %v1289, 6
        %v1312 = vperm.slane %v1290, 0
        %v1313 = vperm.slane %v1290, 2
        %v1314 = vperm.slane %v1290, 4
        %v1315 = vperm.slane %v1290, 6
        %v1316 = vperm.slane %v1291, 0
        %v1317 = vperm.slane %v1291, 2
        %v1336 = vperm.slane %v1300, 0
        %v1337 = vperm.slane %v1301, 0
        %v1338 = vperm.slane %v1302, 0
        %v1339 = vperm.slane %v1303, 0
        %v1340 = vperm.slane %v1304, 0
        %v1341 = vperm.slane %v1305, 0
        %v1342 = vperm.slane %v1306, 0
        %v1343 = vperm.slane %v1307, 0
        %v1344 = vperm.slane %v1308, 0
        %v1345 = vperm.slane %v1309, 0
        %v1346 = vperm.slane %v1310, 0
        %v1347 = vperm.slane %v1311, 0
        %v1348 = vperm.slane %v1312, 0
        %v1349 = vperm.slane %v1313, 0
        %v1350 = vperm.slane %v1314, 0
        %v1351 = vperm.slane %v1315, 0
        %v1352 = vperm.slane %v1316, 0
        %v1353 = vperm.slane %v1317, 0
        %v1354 = vadd.f32 %v1292, %v1336
        %v1355 = vadd.f32 %v1292, %v1337
        %v1356 = vadd.f32 %v1292, %v1338
        %v1357 = vadd.f32 %v1292, %v1339
        %v1358 = vadd.f32 %v1292, %v1340
        %v1359 = vadd.f32 %v1292, %v1341
        %v1360 = vadd.f32 %v1292, %v1342
        %v1361 = vadd.f32 %v1292, %v1343
        %v1362 = vadd.f32 %v1292, %v1344
        %v1363 = vadd.f32 %v1292, %v1345
        %v1364 = vadd.f32 %v1292, %v1346
        %v1365 = vadd.f32 %v1292, %v1347
        %v1366 = vadd.f32 %v1292, %v1348
        %v1367 = vadd.f32 %v1292, %v1349
        %v1368 = vadd.f32 %v1292, %v1350
        %v1369 = vadd.f32 %v1292, %v1351
        %v1370 = vadd.f32 %v1292, %v1352
        %v1371 = vadd.f32 %v1292, %v1353
        %v1372 = vadd.f32 %v1293, %v1336
        %v1373 = vadd.f32 %v1293, %v1337
        %v1374 = vadd.f32 %v1293, %v1338
        %v1375 = vadd.f32 %v1293, %v1339
        %v1376 = vadd.f32 %v1293, %v1340
        %v1377 = vadd.f32 %v1293, %v1341
        %v1378 = vadd.f32 %v1293, %v1342
        %v1379 = vadd.f32 %v1293, %v1343
        %v1380 = vadd.f32 %v1293, %v1344
        %v1381 = vadd.f32 %v1293, %v1345
        %v1382 = vadd.f32 %v1293, %v1346
        %v1383 = vadd.f32 %v1293, %v1347
        %v1384 = vadd.f32 %v1293, %v1348
        %v1385 = vadd.f32 %v1293, %v1349
        %v1386 = vadd.f32 %v1293, %v1350
        %v1387 = vadd.f32 %v1293, %v1351
        %v1388 = vadd.f32 %v1293, %v1352
        %v1389 = vadd.f32 %v1293, %v1353
        %v1390 = vadd.f32 %v1294, %v1336
        %v1391 = vadd.f32 %v1294, %v1337
        %v1392 = vadd.f32 %v1294, %v1338
        %v1393 = vadd.f32 %v1294, %v1339
        %v1394 = vadd.f32 %v1294, %v1340
        %v1395 = vadd.f32 %v1294, %v1341
        %v1396 = vadd.f32 %v1294, %v1342
        %v1397 = vadd.f32 %v1294, %v1343
        %v1398 = vadd.f32 %v1294, %v1344
        %v1399 = vadd.f32 %v1294, %v1345
        %v1400 = vadd.f32 %v1294, %v1346
        %v1401 = vadd.f32 %v1294, %v1347
        %v1402 = vadd.f32 %v1294, %v1348
        %v1403 = vadd.f32 %v1294, %v1349
        %v1404 = vadd.f32 %v1294, %v1350
        %v1405 = vadd.f32 %v1294, %v1351
        %v1406 = vadd.f32 %v1294, %v1352
        %v1407 = vadd.f32 %v1294, %v1353
        %v1408 = vmin.f32 %v1184, %v1354
        %v1409 = vmin.f32 %v1185, %v1355
        %v1410 = vmin.f32 %v1186, %v1356
        %v1411 = vmin.f32 %v1187, %v1357
        %v1412 = vmin.f32 %v1188, %v1358
        %v1413 = vmin.f32 %v1189, %v1359
        %v1414 = vmin.f32 %v1190, %v1360
        %v1415 = vmin.f32 %v1191, %v1361
        %v1416 = vmin.f32 %v1192, %v1362
        %v1417 = vmin.f32 %v1193, %v1363
        %v1418 = vmin.f32 %v1194, %v1364
        %v1419 = vmin.f32 %v1195, %v1365
        %v1420 = vmin.f32 %v1196, %v1366
        %v1421 = vmin.f32 %v1197, %v1367
        %v1422 = vmin.f32 %v1198, %v1368
        %v1423 = vmin.f32 %v1199, %v1369
        %v1424 = vmin.f32 %v1200, %v1370
        %v1425 = vmin.f32 %v1201, %v1371
        %v1426 = vmin.f32 %v1202, %v1372
        %v1427 = vmin.f32 %v1203, %v1373
        %v1428 = vmin.f32 %v1204, %v1374
        %v1429 = vmin.f32 %v1205, %v1375
        %v1430 = vmin.f32 %v1206, %v1376
        %v1431 = vmin.f32 %v1207, %v1377
        %v1432 = vmin.f32 %v1208, %v1378
        %v1433 = vmin.f32 %v1209, %v1379
        %v1434 = vmin.f32 %v1210, %v1380
        %v1435 = vmin.f32 %v1211, %v1381
        %v1436 = vmin.f32 %v1212, %v1382
        %v1437 = vmin.f32 %v1213, %v1383
        %v1438 = vmin.f32 %v1214, %v1384
        %v1439 = vmin.f32 %v1215, %v1385
        %v1440 = vmin.f32 %v1216, %v1386
        %v1441 = vmin.f32 %v1217, %v1387
        %v1442 = vmin.f32 %v1218, %v1388
        %v1443 = vmin.f32 %v1219, %v1389
        %v1444 = vmin.f32 %v1220, %v1390
        %v1445 = vmin.f32 %v1221, %v1391
        %v1446 = vmin.f32 %v1222, %v1392
        %v1447 = vmin.f32 %v1223, %v1393
        %v1448 = vmin.f32 %v1224, %v1394
        %v1449 = vmin.f32 %v1225, %v1395
        %v1450 = vmin.f32 %v1226, %v1396
        %v1451 = vmin.f32 %v1227, %v1397
        %v1452 = vmin.f32 %v1228, %v1398
        %v1453 = vmin.f32 %v1229, %v1399
        %v1454 = vmin.f32 %v1230, %v1400
        %v1455 = vmin.f32 %v1231, %v1401
        %v1456 = vmin.f32 %v1232, %v1402
        %v1457 = vmin.f32 %v1233, %v1403
        %v1458 = vmin.f32 %v1234, %v1404
        %v1459 = vmin.f32 %v1235, %v1405
        %v1460 = vmin.f32 %v1236, %v1406
        %v1461 = vmin.f32 %v1237, %v1407
        %s1462 = sld [smem:[#allocation2 + $0x12]]
        %s1463 = sld [smem:[#allocation2 + $0x13]]
        %s1464 = sld [smem:[#allocation2 + $0x14]]
        %v1465 = vstv %s1462
        %v1466 = vsub.f32 %v1465, %v164
        %v1467 = vsub.f32 %v1465, %v165
        %v1468 = vsub.f32 %v1465, %v166
        %v1469 = vstv %s1463
        %v1470 = vsub.f32 %v1469, %v167
        %v1471 = vsub.f32 %v1469, %v168
        %v1472 = vsub.f32 %v1469, %v169
        %v1473 = vsub.f32 %v1469, %v170
        %v1474 = vsub.f32 %v1469, %v171
        %v1475 = vstv %s1464
        %v1476 = vsub.f32 %v1475, %v167
        %v1477 = vsub.f32 %v1475, %v168
        %v1478 = vsub.f32 %v1475, %v169
        %v1479 = vsub.f32 %v1475, %v170
        %v1480 = vsub.f32 %v1475, %v171
        %v1481 = vmul.f32 %v1470, %v1470
        %v1482 = vmul.f32 %v1471, %v1471
        %v1483 = vmul.f32 %v1472, %v1472
        %v1484 = vmul.f32 %v1473, %v1473
        %v1485 = vmul.f32 %v1474, %v1474
        %v1486 = vmul.f32 %v1476, %v1476
        %v1487 = vmul.f32 %v1477, %v1477
        %v1488 = vmul.f32 %v1478, %v1478
        %v1489 = vmul.f32 %v1479, %v1479
        %v1490 = vmul.f32 %v1480, %v1480
        %v1496 = vrot.slane %v1486, 7
        %v1497 = vrot.slane %v1496, 2
        %v1498 = vrot.slane %v1487, 7
        %v1499 = vrot.slane %v1498, 2
        %v1500 = vrot.slane %v1488, 7
        %v1501 = vrot.slane %v1500, 2
        %v1502 = vrot.slane %v1489, 7
        %v1503 = vrot.slane %v1502, 2
        %v1504 = vrot.slane %v1490, 7
        %v1505 = vrot.slane %v1504, 2
        %v1511 = vadd.f32 %v1481, %v1497
        %v1512 = vadd.f32 %v1482, %v1499
        %v1513 = vadd.f32 %v1483, %v1501
        %v1514 = vadd.f32 %v1484, %v1503
        %v1515 = vadd.f32 %v1485, %v1505
        %v1516 = vmul.f32 %v1466, %v1466
        %v1517 = vmul.f32 %v1467, %v1467
        %v1518 = vmul.f32 %v1468, %v1468
        %v1524 = vperm.slane %v1511, 0
        %v1525 = vperm.slane %v1511, 2
        %v1526 = vperm.slane %v1511, 4
        %v1527 = vperm.slane %v1511, 6
        %v1528 = vperm.slane %v1512, 0
        %v1529 = vperm.slane %v1512, 2
        %v1530 = vperm.slane %v1512, 4
        %v1531 = vperm.slane %v1512, 6
        %v1532 = vperm.slane %v1513, 0
        %v1533 = vperm.slane %v1513, 2
        %v1534 = vperm.slane %v1513, 4
        %v1535 = vperm.slane %v1513, 6
        %v1536 = vperm.slane %v1514, 0
        %v1537 = vperm.slane %v1514, 2
        %v1538 = vperm.slane %v1514, 4
        %v1539 = vperm.slane %v1514, 6
        %v1540 = vperm.slane %v1515, 0
        %v1541 = vperm.slane %v1515, 2
        %v1560 = vperm.slane %v1524, 0
        %v1561 = vperm.slane %v1525, 0
        %v1562 = vperm.slane %v1526, 0
        %v1563 = vperm.slane %v1527, 0
        %v1564 = vperm.slane %v1528, 0
        %v1565 = vperm.slane %v1529, 0
        %v1566 = vperm.slane %v1530, 0
        %v1567 = vperm.slane %v1531, 0
        %v1568 = vperm.slane %v1532, 0
        %v1569 = vperm.slane %v1533, 0
        %v1570 = vperm.slane %v1534, 0
        %v1571 = vperm.slane %v1535, 0
        %v1572 = vperm.slane %v1536, 0
        %v1573 = vperm.slane %v1537, 0
        %v1574 = vperm.slane %v1538, 0
        %v1575 = vperm.slane %v1539, 0
        %v1576 = vperm.slane %v1540, 0
        %v1577 = vperm.slane %v1541, 0
        %v1578 = vadd.f32 %v1516, %v1560
        %v1579 = vadd.f32 %v1516, %v1561
        %v1580 = vadd.f32 %v1516, %v1562
        %v1581 = vadd.f32 %v1516, %v1563
        %v1582 = vadd.f32 %v1516, %v1564
        %v1583 = vadd.f32 %v1516, %v1565
        %v1584 = vadd.f32 %v1516, %v1566
        %v1585 = vadd.f32 %v1516, %v1567
        %v1586 = vadd.f32 %v1516, %v1568
        %v1587 = vadd.f32 %v1516, %v1569
        %v1588 = vadd.f32 %v1516, %v1570
        %v1589 = vadd.f32 %v1516, %v1571
        %v1590 = vadd.f32 %v1516, %v1572
        %v1591 = vadd.f32 %v1516, %v1573
        %v1592 = vadd.f32 %v1516, %v1574
        %v1593 = vadd.f32 %v1516, %v1575
        %v1594 = vadd.f32 %v1516, %v1576
        %v1595 = vadd.f32 %v1516, %v1577
        %v1596 = vadd.f32 %v1517, %v1560
        %v1597 = vadd.f32 %v1517, %v1561
        %v1598 = vadd.f32 %v1517, %v1562
        %v1599 = vadd.f32 %v1517, %v1563
        %v1600 = vadd.f32 %v1517, %v1564
        %v1601 = vadd.f32 %v1517, %v1565
        %v1602 = vadd.f32 %v1517, %v1566
        %v1603 = vadd.f32 %v1517, %v1567
        %v1604 = vadd.f32 %v1517, %v1568
        %v1605 = vadd.f32 %v1517, %v1569
        %v1606 = vadd.f32 %v1517, %v1570
        %v1607 = vadd.f32 %v1517, %v1571
        %v1608 = vadd.f32 %v1517, %v1572
        %v1609 = vadd.f32 %v1517, %v1573
        %v1610 = vadd.f32 %v1517, %v1574
        %v1611 = vadd.f32 %v1517, %v1575
        %v1612 = vadd.f32 %v1517, %v1576
        %v1613 = vadd.f32 %v1517, %v1577
        %v1614 = vadd.f32 %v1518, %v1560
        %v1615 = vadd.f32 %v1518, %v1561
        %v1616 = vadd.f32 %v1518, %v1562
        %v1617 = vadd.f32 %v1518, %v1563
        %v1618 = vadd.f32 %v1518, %v1564
        %v1619 = vadd.f32 %v1518, %v1565
        %v1620 = vadd.f32 %v1518, %v1566
        %v1621 = vadd.f32 %v1518, %v1567
        %v1622 = vadd.f32 %v1518, %v1568
        %v1623 = vadd.f32 %v1518, %v1569
        %v1624 = vadd.f32 %v1518, %v1570
        %v1625 = vadd.f32 %v1518, %v1571
        %v1626 = vadd.f32 %v1518, %v1572
        %v1627 = vadd.f32 %v1518, %v1573
        %v1628 = vadd.f32 %v1518, %v1574
        %v1629 = vadd.f32 %v1518, %v1575
        %v1630 = vadd.f32 %v1518, %v1576
        %v1631 = vadd.f32 %v1518, %v1577
        %v1632 = vmin.f32 %v1408, %v1578
        %v1633 = vmin.f32 %v1409, %v1579
        %v1634 = vmin.f32 %v1410, %v1580
        %v1635 = vmin.f32 %v1411, %v1581
        %v1636 = vmin.f32 %v1412, %v1582
        %v1637 = vmin.f32 %v1413, %v1583
        %v1638 = vmin.f32 %v1414, %v1584
        %v1639 = vmin.f32 %v1415, %v1585
        %v1640 = vmin.f32 %v1416, %v1586
        %v1641 = vmin.f32 %v1417, %v1587
        %v1642 = vmin.f32 %v1418, %v1588
        %v1643 = vmin.f32 %v1419, %v1589
        %v1644 = vmin.f32 %v1420, %v1590
        %v1645 = vmin.f32 %v1421, %v1591
        %v1646 = vmin.f32 %v1422, %v1592
        %v1647 = vmin.f32 %v1423, %v1593
        %v1648 = vmin.f32 %v1424, %v1594
        %v1649 = vmin.f32 %v1425, %v1595
        %v1650 = vmin.f32 %v1426, %v1596
        %v1651 = vmin.f32 %v1427, %v1597
        %v1652 = vmin.f32 %v1428, %v1598
        %v1653 = vmin.f32 %v1429, %v1599
        %v1654 = vmin.f32 %v1430, %v1600
        %v1655 = vmin.f32 %v1431, %v1601
        %v1656 = vmin.f32 %v1432, %v1602
        %v1657 = vmin.f32 %v1433, %v1603
        %v1658 = vmin.f32 %v1434, %v1604
        %v1659 = vmin.f32 %v1435, %v1605
        %v1660 = vmin.f32 %v1436, %v1606
        %v1661 = vmin.f32 %v1437, %v1607
        %v1662 = vmin.f32 %v1438, %v1608
        %v1663 = vmin.f32 %v1439, %v1609
        %v1664 = vmin.f32 %v1440, %v1610
        %v1665 = vmin.f32 %v1441, %v1611
        %v1666 = vmin.f32 %v1442, %v1612
        %v1667 = vmin.f32 %v1443, %v1613
        %v1668 = vmin.f32 %v1444, %v1614
        %v1669 = vmin.f32 %v1445, %v1615
        %v1670 = vmin.f32 %v1446, %v1616
        %v1671 = vmin.f32 %v1447, %v1617
        %v1672 = vmin.f32 %v1448, %v1618
        %v1673 = vmin.f32 %v1449, %v1619
        %v1674 = vmin.f32 %v1450, %v1620
        %v1675 = vmin.f32 %v1451, %v1621
        %v1676 = vmin.f32 %v1452, %v1622
        %v1677 = vmin.f32 %v1453, %v1623
        %v1678 = vmin.f32 %v1454, %v1624
        %v1679 = vmin.f32 %v1455, %v1625
        %v1680 = vmin.f32 %v1456, %v1626
        %v1681 = vmin.f32 %v1457, %v1627
        %v1682 = vmin.f32 %v1458, %v1628
        %v1683 = vmin.f32 %v1459, %v1629
        %v1684 = vmin.f32 %v1460, %v1630
        %v1685 = vmin.f32 %v1461, %v1631
        %s1686 = sld [smem:[#allocation2 + $0x15]]
        %s1687 = sld [smem:[#allocation2 + $0x16]]
        %s1688 = sld [smem:[#allocation2 + $0x17]]
        %v1689 = vstv %s1686
        %v1690 = vsub.f32 %v1689, %v164
        %v1691 = vsub.f32 %v1689, %v165
        %v1692 = vsub.f32 %v1689, %v166
        %v1693 = vstv %s1687
        %v1694 = vsub.f32 %v1693, %v167
        %v1695 = vsub.f32 %v1693, %v168
        %v1696 = vsub.f32 %v1693, %v169
        %v1697 = vsub.f32 %v1693, %v170
        %v1698 = vsub.f32 %v1693, %v171
        %v1699 = vstv %s1688
        %v1700 = vsub.f32 %v1699, %v167
        %v1701 = vsub.f32 %v1699, %v168
        %v1702 = vsub.f32 %v1699, %v169
        %v1703 = vsub.f32 %v1699, %v170
        %v1704 = vsub.f32 %v1699, %v171
        %v1705 = vmul.f32 %v1694, %v1694
        %v1706 = vmul.f32 %v1695, %v1695
        %v1707 = vmul.f32 %v1696, %v1696
        %v1708 = vmul.f32 %v1697, %v1697
        %v1709 = vmul.f32 %v1698, %v1698
        %v1710 = vmul.f32 %v1700, %v1700
        %v1711 = vmul.f32 %v1701, %v1701
        %v1712 = vmul.f32 %v1702, %v1702
        %v1713 = vmul.f32 %v1703, %v1703
        %v1714 = vmul.f32 %v1704, %v1704
        %v1720 = vrot.slane %v1710, 7
        %v1721 = vrot.slane %v1720, 2
        %v1722 = vrot.slane %v1711, 7
        %v1723 = vrot.slane %v1722, 2
        %v1724 = vrot.slane %v1712, 7
        %v1725 = vrot.slane %v1724, 2
        %v1726 = vrot.slane %v1713, 7
        %v1727 = vrot.slane %v1726, 2
        %v1728 = vrot.slane %v1714, 7
        %v1729 = vrot.slane %v1728, 2
        %v1735 = vadd.f32 %v1705, %v1721
        %v1736 = vadd.f32 %v1706, %v1723
        %v1737 = vadd.f32 %v1707, %v1725
        %v1738 = vadd.f32 %v1708, %v1727
        %v1739 = vadd.f32 %v1709, %v1729
        %v1740 = vmul.f32 %v1690, %v1690
        %v1741 = vmul.f32 %v1691, %v1691
        %v1742 = vmul.f32 %v1692, %v1692
        %v1748 = vperm.slane %v1735, 0
        %v1749 = vperm.slane %v1735, 2
        %v1750 = vperm.slane %v1735, 4
        %v1751 = vperm.slane %v1735, 6
        %v1752 = vperm.slane %v1736, 0
        %v1753 = vperm.slane %v1736, 2
        %v1754 = vperm.slane %v1736, 4
        %v1755 = vperm.slane %v1736, 6
        %v1756 = vperm.slane %v1737, 0
        %v1757 = vperm.slane %v1737, 2
        %v1758 = vperm.slane %v1737, 4
        %v1759 = vperm.slane %v1737, 6
        %v1760 = vperm.slane %v1738, 0
        %v1761 = vperm.slane %v1738, 2
        %v1762 = vperm.slane %v1738, 4
        %v1763 = vperm.slane %v1738, 6
        %v1764 = vperm.slane %v1739, 0
        %v1765 = vperm.slane %v1739, 2
        %v1784 = vperm.slane %v1748, 0
        %v1785 = vperm.slane %v1749, 0
        %v1786 = vperm.slane %v1750, 0
        %v1787 = vperm.slane %v1751, 0
        %v1788 = vperm.slane %v1752, 0
        %v1789 = vperm.slane %v1753, 0
        %v1790 = vperm.slane %v1754, 0
        %v1791 = vperm.slane %v1755, 0
        %v1792 = vperm.slane %v1756, 0
        %v1793 = vperm.slane %v1757, 0
        %v1794 = vperm.slane %v1758, 0
        %v1795 = vperm.slane %v1759, 0
        %v1796 = vperm.slane %v1760, 0
        %v1797 = vperm.slane %v1761, 0
        %v1798 = vperm.slane %v1762, 0
        %v1799 = vperm.slane %v1763, 0
        %v1800 = vperm.slane %v1764, 0
        %v1801 = vperm.slane %v1765, 0
        %v1802 = vadd.f32 %v1740, %v1784
        %v1803 = vadd.f32 %v1740, %v1785
        %v1804 = vadd.f32 %v1740, %v1786
        %v1805 = vadd.f32 %v1740, %v1787
        %v1806 = vadd.f32 %v1740, %v1788
        %v1807 = vadd.f32 %v1740, %v1789
        %v1808 = vadd.f32 %v1740, %v1790
        %v1809 = vadd.f32 %v1740, %v1791
        %v1810 = vadd.f32 %v1740, %v1792
        %v1811 = vadd.f32 %v1740, %v1793
        %v1812 = vadd.f32 %v1740, %v1794
        %v1813 = vadd.f32 %v1740, %v1795
        %v1814 = vadd.f32 %v1740, %v1796
        %v1815 = vadd.f32 %v1740, %v1797
        %v1816 = vadd.f32 %v1740, %v1798
        %v1817 = vadd.f32 %v1740, %v1799
        %v1818 = vadd.f32 %v1740, %v1800
        %v1819 = vadd.f32 %v1740, %v1801
        %v1820 = vadd.f32 %v1741, %v1784
        %v1821 = vadd.f32 %v1741, %v1785
        %v1822 = vadd.f32 %v1741, %v1786
        %v1823 = vadd.f32 %v1741, %v1787
        %v1824 = vadd.f32 %v1741, %v1788
        %v1825 = vadd.f32 %v1741, %v1789
        %v1826 = vadd.f32 %v1741, %v1790
        %v1827 = vadd.f32 %v1741, %v1791
        %v1828 = vadd.f32 %v1741, %v1792
        %v1829 = vadd.f32 %v1741, %v1793
        %v1830 = vadd.f32 %v1741, %v1794
        %v1831 = vadd.f32 %v1741, %v1795
        %v1832 = vadd.f32 %v1741, %v1796
        %v1833 = vadd.f32 %v1741, %v1797
        %v1834 = vadd.f32 %v1741, %v1798
        %v1835 = vadd.f32 %v1741, %v1799
        %v1836 = vadd.f32 %v1741, %v1800
        %v1837 = vadd.f32 %v1741, %v1801
        %v1838 = vadd.f32 %v1742, %v1784
        %v1839 = vadd.f32 %v1742, %v1785
        %v1840 = vadd.f32 %v1742, %v1786
        %v1841 = vadd.f32 %v1742, %v1787
        %v1842 = vadd.f32 %v1742, %v1788
        %v1843 = vadd.f32 %v1742, %v1789
        %v1844 = vadd.f32 %v1742, %v1790
        %v1845 = vadd.f32 %v1742, %v1791
        %v1846 = vadd.f32 %v1742, %v1792
        %v1847 = vadd.f32 %v1742, %v1793
        %v1848 = vadd.f32 %v1742, %v1794
        %v1849 = vadd.f32 %v1742, %v1795
        %v1850 = vadd.f32 %v1742, %v1796
        %v1851 = vadd.f32 %v1742, %v1797
        %v1852 = vadd.f32 %v1742, %v1798
        %v1853 = vadd.f32 %v1742, %v1799
        %v1854 = vadd.f32 %v1742, %v1800
        %v1855 = vadd.f32 %v1742, %v1801
        %v1856 = vmin.f32 %v1632, %v1802
        %v1857 = vmin.f32 %v1633, %v1803
        %v1858 = vmin.f32 %v1634, %v1804
        %v1859 = vmin.f32 %v1635, %v1805
        %v1860 = vmin.f32 %v1636, %v1806
        %v1861 = vmin.f32 %v1637, %v1807
        %v1862 = vmin.f32 %v1638, %v1808
        %v1863 = vmin.f32 %v1639, %v1809
        %v1864 = vmin.f32 %v1640, %v1810
        %v1865 = vmin.f32 %v1641, %v1811
        %v1866 = vmin.f32 %v1642, %v1812
        %v1867 = vmin.f32 %v1643, %v1813
        %v1868 = vmin.f32 %v1644, %v1814
        %v1869 = vmin.f32 %v1645, %v1815
        %v1870 = vmin.f32 %v1646, %v1816
        %v1871 = vmin.f32 %v1647, %v1817
        %v1872 = vmin.f32 %v1648, %v1818
        %v1873 = vmin.f32 %v1649, %v1819
        %v1874 = vmin.f32 %v1650, %v1820
        %v1875 = vmin.f32 %v1651, %v1821
        %v1876 = vmin.f32 %v1652, %v1822
        %v1877 = vmin.f32 %v1653, %v1823
        %v1878 = vmin.f32 %v1654, %v1824
        %v1879 = vmin.f32 %v1655, %v1825
        %v1880 = vmin.f32 %v1656, %v1826
        %v1881 = vmin.f32 %v1657, %v1827
        %v1882 = vmin.f32 %v1658, %v1828
        %v1883 = vmin.f32 %v1659, %v1829
        %v1884 = vmin.f32 %v1660, %v1830
        %v1885 = vmin.f32 %v1661, %v1831
        %v1886 = vmin.f32 %v1662, %v1832
        %v1887 = vmin.f32 %v1663, %v1833
        %v1888 = vmin.f32 %v1664, %v1834
        %v1889 = vmin.f32 %v1665, %v1835
        %v1890 = vmin.f32 %v1666, %v1836
        %v1891 = vmin.f32 %v1667, %v1837
        %v1892 = vmin.f32 %v1668, %v1838
        %v1893 = vmin.f32 %v1669, %v1839
        %v1894 = vmin.f32 %v1670, %v1840
        %v1895 = vmin.f32 %v1671, %v1841
        %v1896 = vmin.f32 %v1672, %v1842
        %v1897 = vmin.f32 %v1673, %v1843
        %v1898 = vmin.f32 %v1674, %v1844
        %v1899 = vmin.f32 %v1675, %v1845
        %v1900 = vmin.f32 %v1676, %v1846
        %v1901 = vmin.f32 %v1677, %v1847
        %v1902 = vmin.f32 %v1678, %v1848
        %v1903 = vmin.f32 %v1679, %v1849
        %v1904 = vmin.f32 %v1680, %v1850
        %v1905 = vmin.f32 %v1681, %v1851
        %v1906 = vmin.f32 %v1682, %v1852
        %v1907 = vmin.f32 %v1683, %v1853
        %v1908 = vmin.f32 %v1684, %v1854
        %v1909 = vmin.f32 %v1685, %v1855
        %vm1910 = vcmp.lt.f32.partialorder %v1856, 5.1984
        %vm1911 = vcmp.lt.f32.partialorder %v1857, 5.1984
        %vm1912 = vcmp.lt.f32.partialorder %v1858, 5.1984
        %vm1913 = vcmp.lt.f32.partialorder %v1859, 5.1984
        %vm1914 = vcmp.lt.f32.partialorder %v1860, 5.1984
        %vm1915 = vcmp.lt.f32.partialorder %v1861, 5.1984
        %vm1916 = vcmp.lt.f32.partialorder %v1862, 5.1984
        %vm1917 = vcmp.lt.f32.partialorder %v1863, 5.1984
        %vm1918 = vcmp.lt.f32.partialorder %v1864, 5.1984
        %vm1919 = vcmp.lt.f32.partialorder %v1865, 5.1984
        %vm1920 = vcmp.lt.f32.partialorder %v1866, 5.1984
        %vm1921 = vcmp.lt.f32.partialorder %v1867, 5.1984
        %vm1922 = vcmp.lt.f32.partialorder %v1868, 5.1984
        %vm1923 = vcmp.lt.f32.partialorder %v1869, 5.1984
        %vm1924 = vcmp.lt.f32.partialorder %v1870, 5.1984
        %vm1925 = vcmp.lt.f32.partialorder %v1871, 5.1984
        %vm1926 = vcmp.lt.f32.partialorder %v1872, 5.1984
        %vm1927 = vcmp.lt.f32.partialorder %v1873, 5.1984
        %vm1928 = vcmp.lt.f32.partialorder %v1874, 5.1984
        %vm1929 = vcmp.lt.f32.partialorder %v1875, 5.1984
        %vm1930 = vcmp.lt.f32.partialorder %v1876, 5.1984
        %vm1931 = vcmp.lt.f32.partialorder %v1877, 5.1984
        %vm1932 = vcmp.lt.f32.partialorder %v1878, 5.1984
        %vm1933 = vcmp.lt.f32.partialorder %v1879, 5.1984
        %vm1934 = vcmp.lt.f32.partialorder %v1880, 5.1984
        %vm1935 = vcmp.lt.f32.partialorder %v1881, 5.1984
        %vm1936 = vcmp.lt.f32.partialorder %v1882, 5.1984
        %vm1937 = vcmp.lt.f32.partialorder %v1883, 5.1984
        %vm1938 = vcmp.lt.f32.partialorder %v1884, 5.1984
        %vm1939 = vcmp.lt.f32.partialorder %v1885, 5.1984
        %vm1940 = vcmp.lt.f32.partialorder %v1886, 5.1984
        %vm1941 = vcmp.lt.f32.partialorder %v1887, 5.1984
        %vm1942 = vcmp.lt.f32.partialorder %v1888, 5.1984
        %vm1943 = vcmp.lt.f32.partialorder %v1889, 5.1984
        %vm1944 = vcmp.lt.f32.partialorder %v1890, 5.1984
        %vm1945 = vcmp.lt.f32.partialorder %v1891, 5.1984
        %vm1946 = vcmp.lt.f32.partialorder %v1892, 5.1984
        %vm1947 = vcmp.lt.f32.partialorder %v1893, 5.1984
        %vm1948 = vcmp.lt.f32.partialorder %v1894, 5.1984
        %vm1949 = vcmp.lt.f32.partialorder %v1895, 5.1984
        %vm1950 = vcmp.lt.f32.partialorder %v1896, 5.1984
        %vm1951 = vcmp.lt.f32.partialorder %v1897, 5.1984
        %vm1952 = vcmp.lt.f32.partialorder %v1898, 5.1984
        %vm1953 = vcmp.lt.f32.partialorder %v1899, 5.1984
        %vm1954 = vcmp.lt.f32.partialorder %v1900, 5.1984
        %vm1955 = vcmp.lt.f32.partialorder %v1901, 5.1984
        %vm1956 = vcmp.lt.f32.partialorder %v1902, 5.1984
        %vm1957 = vcmp.lt.f32.partialorder %v1903, 5.1984
        %vm1958 = vcmp.lt.f32.partialorder %v1904, 5.1984
        %vm1959 = vcmp.lt.f32.partialorder %v1905, 5.1984
        %vm1960 = vcmp.lt.f32.partialorder %v1906, 5.1984
        %vm1961 = vcmp.lt.f32.partialorder %v1907, 5.1984
        %vm1962 = vcmp.lt.f32.partialorder %v1908, 5.1984
        %vm1963 = vcmp.lt.f32.partialorder %v1909, 5.1984
        %v1964 = vsel %vm1910, 1, 0
        %v1965 = vsel %vm1911, 1, 0
        %v1966 = vsel %vm1912, 1, 0
        %v1967 = vsel %vm1913, 1, 0
        %v1968 = vsel %vm1914, 1, 0
        %v1969 = vsel %vm1915, 1, 0
        %v1970 = vsel %vm1916, 1, 0
        %v1971 = vsel %vm1917, 1, 0
        %v1972 = vsel %vm1918, 1, 0
        %v1973 = vsel %vm1919, 1, 0
        %v1974 = vsel %vm1920, 1, 0
        %v1975 = vsel %vm1921, 1, 0
        %v1976 = vsel %vm1922, 1, 0
        %v1977 = vsel %vm1923, 1, 0
        %v1978 = vsel %vm1924, 1, 0
        %v1979 = vsel %vm1925, 1, 0
        %v1980 = vsel %vm1926, 1, 0
        %v1981 = vsel %vm1927, 1, 0
        %v1982 = vsel %vm1928, 1, 0
        %v1983 = vsel %vm1929, 1, 0
        %v1984 = vsel %vm1930, 1, 0
        %v1985 = vsel %vm1931, 1, 0
        %v1986 = vsel %vm1932, 1, 0
        %v1987 = vsel %vm1933, 1, 0
        %v1988 = vsel %vm1934, 1, 0
        %v1989 = vsel %vm1935, 1, 0
        %v1990 = vsel %vm1936, 1, 0
        %v1991 = vsel %vm1937, 1, 0
        %v1992 = vsel %vm1938, 1, 0
        %v1993 = vsel %vm1939, 1, 0
        %v1994 = vsel %vm1940, 1, 0
        %v1995 = vsel %vm1941, 1, 0
        %v1996 = vsel %vm1942, 1, 0
        %v1997 = vsel %vm1943, 1, 0
        %v1998 = vsel %vm1944, 1, 0
        %v1999 = vsel %vm1945, 1, 0
        %v2000 = vsel %vm1946, 1, 0
        %v2001 = vsel %vm1947, 1, 0
        %v2002 = vsel %vm1948, 1, 0
        %v2003 = vsel %vm1949, 1, 0
        %v2004 = vsel %vm1950, 1, 0
        %v2005 = vsel %vm1951, 1, 0
        %v2006 = vsel %vm1952, 1, 0
        %v2007 = vsel %vm1953, 1, 0
        %v2008 = vsel %vm1954, 1, 0
        %v2009 = vsel %vm1955, 1, 0
        %v2010 = vsel %vm1956, 1, 0
        %v2011 = vsel %vm1957, 1, 0
        %v2012 = vsel %vm1958, 1, 0
        %v2013 = vsel %vm1959, 1, 0
        %v2014 = vsel %vm1960, 1, 0
        %v2015 = vsel %vm1961, 1, 0
        %v2016 = vsel %vm1962, 1, 0
        %v2017 = vsel %vm1963, 1, 0
        %v2018 = vcvt.s32.f32 %v1964
        %v2019 = vcvt.s32.f32 %v1965
        %v2020 = vcvt.s32.f32 %v1966
        %v2021 = vcvt.s32.f32 %v1967
        %v2022 = vcvt.s32.f32 %v1968
        %v2023 = vcvt.s32.f32 %v1969
        %v2024 = vcvt.s32.f32 %v1970
        %v2025 = vcvt.s32.f32 %v1971
        %v2026 = vcvt.s32.f32 %v1972
        %v2027 = vcvt.s32.f32 %v1973
        %v2028 = vcvt.s32.f32 %v1974
        %v2029 = vcvt.s32.f32 %v1975
        %v2030 = vcvt.s32.f32 %v1976
        %v2031 = vcvt.s32.f32 %v1977
        %v2032 = vcvt.s32.f32 %v1978
        %v2033 = vcvt.s32.f32 %v1979
        %v2034 = vcvt.s32.f32 %v1980
        %v2035 = vcvt.s32.f32 %v1981
        %v2036 = vcvt.s32.f32 %v1982
        %v2037 = vcvt.s32.f32 %v1983
        %v2038 = vcvt.s32.f32 %v1984
        %v2039 = vcvt.s32.f32 %v1985
        %v2040 = vcvt.s32.f32 %v1986
        %v2041 = vcvt.s32.f32 %v1987
        %v2042 = vcvt.s32.f32 %v1988
        %v2043 = vcvt.s32.f32 %v1989
        %v2044 = vcvt.s32.f32 %v1990
        %v2045 = vcvt.s32.f32 %v1991
        %v2046 = vcvt.s32.f32 %v1992
        %v2047 = vcvt.s32.f32 %v1993
        %v2048 = vcvt.s32.f32 %v1994
        %v2049 = vcvt.s32.f32 %v1995
        %v2050 = vcvt.s32.f32 %v1996
        %v2051 = vcvt.s32.f32 %v1997
        %v2052 = vcvt.s32.f32 %v1998
        %v2053 = vcvt.s32.f32 %v1999
        %v2054 = vcvt.s32.f32 %v2000
        %v2055 = vcvt.s32.f32 %v2001
        %v2056 = vcvt.s32.f32 %v2002
        %v2057 = vcvt.s32.f32 %v2003
        %v2058 = vcvt.s32.f32 %v2004
        %v2059 = vcvt.s32.f32 %v2005
        %v2060 = vcvt.s32.f32 %v2006
        %v2061 = vcvt.s32.f32 %v2007
        %v2062 = vcvt.s32.f32 %v2008
        %v2063 = vcvt.s32.f32 %v2009
        %v2064 = vcvt.s32.f32 %v2010
        %v2065 = vcvt.s32.f32 %v2011
        %v2066 = vcvt.s32.f32 %v2012
        %v2067 = vcvt.s32.f32 %v2013
        %v2068 = vcvt.s32.f32 %v2014
        %v2069 = vcvt.s32.f32 %v2015
        %v2070 = vcvt.s32.f32 %v2016
        %v2071 = vcvt.s32.f32 %v2017
        %2072 = vst [vmem:[%s150] sm:$0xff] %v2018
        %2073 = vst [vmem:[%s150 + $0x8] sm:$0xff] %v2019
        %2074 = vst [vmem:[%s150 + $0x10] sm:$0xff] %v2020
        %2075 = vst [vmem:[%s150 + $0x18] sm:$0xff] %v2021
        %2076 = vst [vmem:[%s150 + $0x20] sm:$0xff] %v2022
        %2077 = vst [vmem:[%s150 + $0x28] sm:$0xff] %v2023
        %2078 = vst [vmem:[%s150 + $0x30] sm:$0xff] %v2024
        %2079 = vst [vmem:[%s150 + $0x38] sm:$0xff] %v2025
        %2080 = vst [vmem:[%s150 + $0x40] sm:$0xff] %v2026
        %2081 = vst [vmem:[%s150 + $0x48] sm:$0xff] %v2027
        %2082 = vst [vmem:[%s150 + $0x50] sm:$0xff] %v2028
        %2083 = vst [vmem:[%s150 + $0x58] sm:$0xff] %v2029
        %2084 = vst [vmem:[%s150 + $0x60] sm:$0xff] %v2030
        %2085 = vst [vmem:[%s150 + $0x68] sm:$0xff] %v2031
        %2086 = vst [vmem:[%s150 + $0x70] sm:$0xff] %v2032
        %2087 = vst [vmem:[%s150 + $0x78] sm:$0xff] %v2033
        %2088 = vst [vmem:[%s150 + $0x80] sm:$0xff] %v2034
        %2089 = vst [vmem:[%s150 + $0x88] sm:$0xff] %v2035
        %2090 = vst [vmem:[%s150 + $0x90] sm:$0xff] %v2036
        %2091 = vst [vmem:[%s150 + $0x98] sm:$0xff] %v2037
        %2092 = vst [vmem:[%s150 + $0xa0] sm:$0xff] %v2038
        %2093 = vst [vmem:[%s150 + $0xa8] sm:$0xff] %v2039
        %2094 = vst [vmem:[%s150 + $0xb0] sm:$0xff] %v2040
        %2095 = vst [vmem:[%s150 + $0xb8] sm:$0xff] %v2041
        %2096 = vst [vmem:[%s150 + $0xc0] sm:$0xff] %v2042
        %2097 = vst [vmem:[%s150 + $0xc8] sm:$0xff] %v2043
        %2098 = vst [vmem:[%s150 + $0xd0] sm:$0xff] %v2044
        %2099 = vst [vmem:[%s150 + $0xd8] sm:$0xff] %v2045
        %2100 = vst [vmem:[%s150 + $0xe0] sm:$0xff] %v2046
        %2101 = vst [vmem:[%s150 + $0xe8] sm:$0xff] %v2047
        %2102 = vst [vmem:[%s150 + $0xf0] sm:$0xff] %v2048
        %2103 = vst [vmem:[%s150 + $0xf8] sm:$0xff] %v2049
        %2104 = vst [vmem:[%s150 + $0x100] sm:$0xff] %v2050
        %2105 = vst [vmem:[%s150 + $0x108] sm:$0xff] %v2051
        %2106 = vst [vmem:[%s150 + $0x110] sm:$0xff] %v2052
        %2107 = vst [vmem:[%s150 + $0x118] sm:$0xff] %v2053
        %2108 = vst [vmem:[%s150 + $0x120] sm:$0xff] %v2054
        %2109 = vst [vmem:[%s150 + $0x128] sm:$0xff] %v2055
        %2110 = vst [vmem:[%s150 + $0x130] sm:$0xff] %v2056
        %2111 = vst [vmem:[%s150 + $0x138] sm:$0xff] %v2057
        %2112 = vst [vmem:[%s150 + $0x140] sm:$0xff] %v2058
        %2113 = vst [vmem:[%s150 + $0x148] sm:$0xff] %v2059
        %2114 = vst [vmem:[%s150 + $0x150] sm:$0xff] %v2060
        %2115 = vst [vmem:[%s150 + $0x158] sm:$0xff] %v2061
        %2116 = vst [vmem:[%s150 + $0x160] sm:$0xff] %v2062
        %2117 = vst [vmem:[%s150 + $0x168] sm:$0xff] %v2063
        %2118 = vst [vmem:[%s150 + $0x170] sm:$0xff] %v2064
        %2119 = vst [vmem:[%s150 + $0x178] sm:$0xff] %v2065
        %2120 = vst [vmem:[%s150 + $0x180] sm:$0xff] %v2066
        %2121 = vst [vmem:[%s150 + $0x188] sm:$0xff] %v2067
        %2122 = vst [vmem:[%s150 + $0x190] sm:$0xff] %v2068
        %2123 = vst [vmem:[%s150 + $0x198] sm:$0xff] %v2069
        %2124 = vst [vmem:[%s150 + $0x1a0] sm:$0xff] %v2070
        %2125 = vst [vmem:[%s150 + $0x1a8] sm:$0xff] %v2071
        %v2126 = vmul.f32 %v2018, 24.0
        %v2127 = vmul.f32 %v2019, 24.0
        %v2128 = vmul.f32 %v2020, 24.0
        %v2129 = vmul.f32 %v2021, 24.0
        %v2130 = vmul.f32 %v2022, 24.0
        %v2131 = vmul.f32 %v2023, 24.0
        %v2132 = vmul.f32 %v2024, 24.0
        %v2133 = vmul.f32 %v2025, 24.0
        %v2134 = vmul.f32 %v2026, 24.0
        %v2135 = vmul.f32 %v2027, 24.0
        %v2136 = vmul.f32 %v2028, 24.0
        %v2137 = vmul.f32 %v2029, 24.0
        %v2138 = vmul.f32 %v2030, 24.0
        %v2139 = vmul.f32 %v2031, 24.0
        %v2140 = vmul.f32 %v2032, 24.0
        %v2141 = vmul.f32 %v2033, 24.0
        %v2142 = vmul.f32 %v2034, 24.0
        %v2143 = vmul.f32 %v2035, 24.0
        %v2144 = vmul.f32 %v2036, 24.0
        %v2145 = vmul.f32 %v2037, 24.0
        %v2146 = vmul.f32 %v2038, 24.0
        %v2147 = vmul.f32 %v2039, 24.0
        %v2148 = vmul.f32 %v2040, 24.0
        %v2149 = vmul.f32 %v2041, 24.0
        %v2150 = vmul.f32 %v2042, 24.0
        %v2151 = vmul.f32 %v2043, 24.0
        %v2152 = vmul.f32 %v2044, 24.0
        %v2153 = vmul.f32 %v2045, 24.0
        %v2154 = vmul.f32 %v2046, 24.0
        %v2155 = vmul.f32 %v2047, 24.0
        %v2156 = vmul.f32 %v2048, 24.0
        %v2157 = vmul.f32 %v2049, 24.0
        %v2158 = vmul.f32 %v2050, 24.0
        %v2159 = vmul.f32 %v2051, 24.0
        %v2160 = vmul.f32 %v2052, 24.0
        %v2161 = vmul.f32 %v2053, 24.0
        %v2162 = vmul.f32 %v2054, 24.0
        %v2163 = vmul.f32 %v2055, 24.0
        %v2164 = vmul.f32 %v2056, 24.0
        %v2165 = vmul.f32 %v2057, 24.0
        %v2166 = vmul.f32 %v2058, 24.0
        %v2167 = vmul.f32 %v2059, 24.0
        %v2168 = vmul.f32 %v2060, 24.0
        %v2169 = vmul.f32 %v2061, 24.0
        %v2170 = vmul.f32 %v2062, 24.0
        %v2171 = vmul.f32 %v2063, 24.0
        %v2172 = vmul.f32 %v2064, 24.0
        %v2173 = vmul.f32 %v2065, 24.0
        %v2174 = vmul.f32 %v2066, 24.0
        %v2175 = vmul.f32 %v2067, 24.0
        %v2176 = vmul.f32 %v2068, 24.0
        %v2177 = vmul.f32 %v2069, 24.0
        %v2178 = vmul.f32 %v2070, 24.0
        %v2179 = vmul.f32 %v2071, 24.0
        %v2180 = vadd.f32 %v2126, 1.0
        %v2181 = vadd.f32 %v2127, 1.0
        %v2182 = vadd.f32 %v2128, 1.0
        %v2183 = vadd.f32 %v2129, 1.0
        %v2184 = vadd.f32 %v2130, 1.0
        %v2185 = vadd.f32 %v2131, 1.0
        %v2186 = vadd.f32 %v2132, 1.0
        %v2187 = vadd.f32 %v2133, 1.0
        %v2188 = vadd.f32 %v2134, 1.0
        %v2189 = vadd.f32 %v2135, 1.0
        %v2190 = vadd.f32 %v2136, 1.0
        %v2191 = vadd.f32 %v2137, 1.0
        %v2192 = vadd.f32 %v2138, 1.0
        %v2193 = vadd.f32 %v2139, 1.0
        %v2194 = vadd.f32 %v2140, 1.0
        %v2195 = vadd.f32 %v2141, 1.0
        %v2196 = vadd.f32 %v2142, 1.0
        %v2197 = vadd.f32 %v2143, 1.0
        %v2198 = vadd.f32 %v2144, 1.0
        %v2199 = vadd.f32 %v2145, 1.0
        %v2200 = vadd.f32 %v2146, 1.0
        %v2201 = vadd.f32 %v2147, 1.0
        %v2202 = vadd.f32 %v2148, 1.0
        %v2203 = vadd.f32 %v2149, 1.0
        %v2204 = vadd.f32 %v2150, 1.0
        %v2205 = vadd.f32 %v2151, 1.0
        %v2206 = vadd.f32 %v2152, 1.0
        %v2207 = vadd.f32 %v2153, 1.0
        %v2208 = vadd.f32 %v2154, 1.0
        %v2209 = vadd.f32 %v2155, 1.0
        %v2210 = vadd.f32 %v2156, 1.0
        %v2211 = vadd.f32 %v2157, 1.0
        %v2212 = vadd.f32 %v2158, 1.0
        %v2213 = vadd.f32 %v2159, 1.0
        %v2214 = vadd.f32 %v2160, 1.0
        %v2215 = vadd.f32 %v2161, 1.0
        %v2216 = vadd.f32 %v2162, 1.0
        %v2217 = vadd.f32 %v2163, 1.0
        %v2218 = vadd.f32 %v2164, 1.0
        %v2219 = vadd.f32 %v2165, 1.0
        %v2220 = vadd.f32 %v2166, 1.0
        %v2221 = vadd.f32 %v2167, 1.0
        %v2222 = vadd.f32 %v2168, 1.0
        %v2223 = vadd.f32 %v2169, 1.0
        %v2224 = vadd.f32 %v2170, 1.0
        %v2225 = vadd.f32 %v2171, 1.0
        %v2226 = vadd.f32 %v2172, 1.0
        %v2227 = vadd.f32 %v2173, 1.0
        %v2228 = vadd.f32 %v2174, 1.0
        %v2229 = vadd.f32 %v2175, 1.0
        %v2230 = vadd.f32 %v2176, 1.0
        %v2231 = vadd.f32 %v2177, 1.0
        %v2232 = vadd.f32 %v2178, 1.0
        %v2233 = vadd.f32 %v2179, 1.0
        %s2234 = scalar_lea.vmem %s150, 432 [#allocation7]
        %2235 = vst [vmem:[%s2234] sm:$0xff] %v2180
        %2236 = vst [vmem:[%s2234 + $0x8] sm:$0xff] %v2181
        %2237 = vst [vmem:[%s2234 + $0x10] sm:$0xff] %v2182
        %2238 = vst [vmem:[%s2234 + $0x18] sm:$0xff] %v2183
        %2239 = vst [vmem:[%s2234 + $0x20] sm:$0xff] %v2184
        %2240 = vst [vmem:[%s2234 + $0x28] sm:$0xff] %v2185
        %2241 = vst [vmem:[%s2234 + $0x30] sm:$0xff] %v2186
        %2242 = vst [vmem:[%s2234 + $0x38] sm:$0xff] %v2187
        %2243 = vst [vmem:[%s2234 + $0x40] sm:$0xff] %v2188
        %2244 = vst [vmem:[%s2234 + $0x48] sm:$0xff] %v2189
        %2245 = vst [vmem:[%s2234 + $0x50] sm:$0xff] %v2190
        %2246 = vst [vmem:[%s2234 + $0x58] sm:$0xff] %v2191
        %2247 = vst [vmem:[%s2234 + $0x60] sm:$0xff] %v2192
        %2248 = vst [vmem:[%s2234 + $0x68] sm:$0xff] %v2193
        %2249 = vst [vmem:[%s2234 + $0x70] sm:$0xff] %v2194
        %2250 = vst [vmem:[%s2234 + $0x78] sm:$0xff] %v2195
        %2251 = vst [vmem:[%s2234 + $0x80] sm:$0xff] %v2196
        %2252 = vst [vmem:[%s2234 + $0x88] sm:$0xff] %v2197
        %2253 = vst [vmem:[%s2234 + $0x90] sm:$0xff] %v2198
        %2254 = vst [vmem:[%s2234 + $0x98] sm:$0xff] %v2199
        %2255 = vst [vmem:[%s2234 + $0xa0] sm:$0xff] %v2200
        %2256 = vst [vmem:[%s2234 + $0xa8] sm:$0xff] %v2201
        %2257 = vst [vmem:[%s2234 + $0xb0] sm:$0xff] %v2202
        %2258 = vst [vmem:[%s2234 + $0xb8] sm:$0xff] %v2203
        %2259 = vst [vmem:[%s2234 + $0xc0] sm:$0xff] %v2204
        %2260 = vst [vmem:[%s2234 + $0xc8] sm:$0xff] %v2205
        %2261 = vst [vmem:[%s2234 + $0xd0] sm:$0xff] %v2206
        %2262 = vst [vmem:[%s2234 + $0xd8] sm:$0xff] %v2207
        %2263 = vst [vmem:[%s2234 + $0xe0] sm:$0xff] %v2208
        %2264 = vst [vmem:[%s2234 + $0xe8] sm:$0xff] %v2209
        %2265 = vst [vmem:[%s2234 + $0xf0] sm:$0xff] %v2210
        %2266 = vst [vmem:[%s2234 + $0xf8] sm:$0xff] %v2211
        %2267 = vst [vmem:[%s2234 + $0x100] sm:$0xff] %v2212
        %2268 = vst [vmem:[%s2234 + $0x108] sm:$0xff] %v2213
        %2269 = vst [vmem:[%s2234 + $0x110] sm:$0xff] %v2214
        %2270 = vst [vmem:[%s2234 + $0x118] sm:$0xff] %v2215
        %2271 = vst [vmem:[%s2234 + $0x120] sm:$0xff] %v2216
        %2272 = vst [vmem:[%s2234 + $0x128] sm:$0xff] %v2217
        %2273 = vst [vmem:[%s2234 + $0x130] sm:$0xff] %v2218
        %2274 = vst [vmem:[%s2234 + $0x138] sm:$0xff] %v2219
        %2275 = vst [vmem:[%s2234 + $0x140] sm:$0xff] %v2220
        %2276 = vst [vmem:[%s2234 + $0x148] sm:$0xff] %v2221
        %2277 = vst [vmem:[%s2234 + $0x150] sm:$0xff] %v2222
        %2278 = vst [vmem:[%s2234 + $0x158] sm:$0xff] %v2223
        %2279 = vst [vmem:[%s2234 + $0x160] sm:$0xff] %v2224
        %2280 = vst [vmem:[%s2234 + $0x168] sm:$0xff] %v2225
        %2281 = vst [vmem:[%s2234 + $0x170] sm:$0xff] %v2226
        %2282 = vst [vmem:[%s2234 + $0x178] sm:$0xff] %v2227
        %2283 = vst [vmem:[%s2234 + $0x180] sm:$0xff] %v2228
        %2284 = vst [vmem:[%s2234 + $0x188] sm:$0xff] %v2229
        %2285 = vst [vmem:[%s2234 + $0x190] sm:$0xff] %v2230
        %2286 = vst [vmem:[%s2234 + $0x198] sm:$0xff] %v2231
        %2287 = vst [vmem:[%s2234 + $0x1a0] sm:$0xff] %v2232
        %2288 = vst [vmem:[%s2234 + $0x1a8] sm:$0xff] %v2233
        %s2289 = sand.u32 %s68, 1
        %s2290 = scalar_lea.sflag [#allocation4], %s2289
        %s2291 = sand.u32 %s68, 1
        %s2292 = smul.addr %s2291, 864
        %s2293 = scalar_lea.vmem [#allocation7], %s2292
        // Predicated region
        $region37: #{tpu_custom_call.1} parent=27 // pred_check
          %p2294 = pneg %p78
        $region38: #{tpu_custom_call.1} parent=27 // pred_check_branch
          %2296 = sbr.rel (%p2294) target = $region40
        $region39: #{tpu_custom_call.1} parent=27 // pred_region
          #allocation9 [shape = 'u32[6]{0}', space=smem, size = 0x18, scoped, tag = 'DMA stride descriptor']
          %s2297 = smul.u32 3, %s18
          %2299 = vsyncadd %s2290, 0
          %s2300 = smul.addr %s2297, 18
          %s2301 = smul.addr %s2300, 8
          %s2302 = scalar_lea.hbm %s2, %s2301
          %s2304 = sshll.u32 1, 14
          %s2305 = sxor.u32 4294967295, %s2304
          %s2308 = sshll.u32 7, 18
          %s2309 = sxor.u32 4294967295, %s2308
          %s2310 = sand.u32 0, %s2309
          %s2312 = sor.u32 %s2310, 0
          %s2313 = sshll.u32 %s2293, 4
          %s2314 = int_to_ptr.vmem [resolvable:$true] %s2313
          %s2315 = sshll.u32 %s2302, 4
          %s2316 = int_to_ptr.hbm [resolvable:$true] %s2315
          %2322 = sst [smem:[#allocation9]] 6912
          %s2323 = scalar_lea.smem [#allocation9], 1
          %2324 = sst [smem:[%s2323]] 13824
          %s2325 = scalar_lea.smem [#allocation9], 2
          %2326 = sst [smem:[%s2325]] 3
          %s2327 = scalar_lea.smem [#allocation9], 3
          %2328 = sst [smem:[%s2327]] 2304
          %s2329 = scalar_lea.smem [#allocation9], 4
          %2330 = sst [smem:[%s2329]] 2304
          %s2331 = scalar_lea.smem [#allocation9], 5
          %2332 = sst [smem:[%s2331]] 144
          %2334 = dma.general %s2314, 13824, %s2316, %s2290, [#allocation8], [#allocation9], %s2312, 0
        $region40: #{tpu_custom_call.1} parent=27 // pred_fallthru
          _
      $region28: #{tpu_custom_call.1} parent=5 // pred_fallthru
        _
      %p2335 = scmp.le.s32.totalorder 2, %s13
      // Predicated region
      $region41: #{tpu_custom_call.1} parent=5 // pred_check
        %p2336 = pneg %p2335
      $region42: #{tpu_custom_call.1} parent=5 // pred_check_branch
        %2338 = sbr.rel (%p2336) target = $region44
      $region43: #{tpu_custom_call.1} parent=5 // pred_region
        %s2339 = ssub.s32 %s13, 2
        // Predicated region
        $region45: #{tpu_custom_call.1} parent=43 // pred_check
          %p2340 = pneg %p84
        $region46: #{tpu_custom_call.1} parent=43 // pred_check_branch
          %2342 = sbr.rel (%p2340) target = $region48
        $region47: #{tpu_custom_call.1} parent=43 // pred_region
          %s2343 = sand.u32 %s69, 1
          %s2344 = scalar_lea.sflag [#allocation4], %s2343
          %s2345 = sand.u32 %s69, 1
          %s2346 = smul.addr %s2345, 864
          %s2347 = scalar_lea.vmem [#allocation7], %s2346
          %2349 = dma.done %s2344, 13824
        $region48: #{tpu_custom_call.1} parent=43 // pred_fallthru
          _
      $region44: #{tpu_custom_call.1} parent=5 // pred_fallthru
        _
    $region6: #{tpu_custom_call.1} parent=1 // loop_footer
      %s17 = sadd.s32 1, %s13
    $region7: #{tpu_custom_call.1} parent=1 // loop_footer_branch
      %12 = sbr.rel target = $region3
    $region8: #{tpu_custom_call.1} parent=1 // loop_exit
      _
    %2350 = vsyncpa [#allocation3], 1
    %s2351 = scalar_lea.sflag [#allocation3], 1
    %2352 = vsyncpa %s2351, 1
    %2353 = vsyncpa [#allocation4], 1
    %s2354 = scalar_lea.sflag [#allocation4], 1
    %2355 = vsyncpa %s2354, 1
    %2356 = vsyncpa [#allocation5], 1
    %s2357 = scalar_lea.sflag [#allocation5], 1
    %2358 = vsyncpa %s2357, 1

</llo_original>
